<compile_context>
chip_gen: v7x
topology: tpu7x:2x2x1
jax: 0.10.0
libtpu: 0.0.40
codegen_flags: <defaults>
</compile_context>

<pallas_src>
import jax
import jax.numpy as jnp
from jax import lax
from jax.experimental import pallas as pl
from jax.experimental.pallas import tpu as pltpu


def _make_encoder_kernel(num_layers, S, B, E, H, small_path, unroll):
    """Kernel: fused embedding gather + `num_layers`-deep stacked LSTM over a sequence.

    Refs (in order):
      tok_ref:  (S*B,) int32 token ids            [SMEM]
      emb_ref:  (V, E) f32 embedding table        [VMEM]
      per layer l: wih_t (D_in, 4H) bf16, whh_t (H, 4H) bf16, bias (1, 4H) f32
      outputs:  h_out (L, B, H) f32, c_out (L, B, H) f32
      scratch:  x_sc (S*B, E) f32, y_sc (S*B, H) f32 [, gx_sc (S*B, 4H) f32 if not small_path]
    """
    G = 4 * H
    SB = S * B
    n_in = 2 + 3 * num_layers

    def kernel(*refs):
        tok_ref = refs[0]
        emb_ref = refs[1]
        w_refs = refs[2:n_in]
        h_out_ref = refs[n_in]
        c_out_ref = refs[n_in + 1]
        x_sc = refs[n_in + 2]
        y_sc = refs[n_in + 3]
        gx_sc = None if small_path else refs[n_in + 4]

        # ---- fused embedding gather: x_sc[i, :] = table[token[i], :] ----
        # (token ids read as scalars from SMEM; dynamic row load from the VMEM table)
        for i in range(SB):
            x_sc[i, :] = emb_ref[tok_ref[i]]
        # TODO(synk): dropout on the embedding is identity in eval mode; no PRNG path.

        for layer in range(num_layers):
            wih_ref, whh_ref, b_ref = w_refs[3 * layer: 3 * layer + 3]
            write_y = layer < num_layers - 1  # last layer's per-step output is unused

            # Previous layer's activations never leave VMEM; 2-D layout, no reshape.
            inp = x_sc[...] if layer == 0 else y_sc[...]
            inp_bf16 = inp.astype(jnp.bfloat16)

            # Whole-sequence input projection: one bf16 MXU matmul, off the recurrence.
            gx = (jnp.dot(inp_bf16, wih_ref[...],
                          preferred_element_type=jnp.float32)
                  + b_ref[...])                                     # (S*B, 4H) f32

            whh = whh_ref[...]                                      # (H, 4H) bf16, hoisted

            def lstm_cell(gx_t, h_prev, c_prev):
                gates = gx_t + jnp.dot(h_prev.astype(jnp.bfloat16), whh,
                                       preferred_element_type=jnp.float32)  # (B, 4H)
                # One full-width sigmoid; tanh only on the g slice (EUP savings).
                sig = jax.nn.sigmoid(gates)
                i_g = sig[:, 0 * H:1 * H]
                f_g = sig[:, 1 * H:2 * H]
                o_g = sig[:, 3 * H:4 * H]
                g_g = jnp.tanh(gates[:, 2 * H:3 * H])
                c_new = f_g * c_prev + i_g * g_g
                h_new = o_g * jnp.tanh(c_new)
                return h_new, c_new

            h = jnp.zeros((B, H), jnp.float32)
            c = jnp.zeros((B, H), jnp.float32)

            if small_path:
                # gx stays in vregs; static slices; fully unrolled time loop.
                for t in range(S):
                    gx_t = gx[t * B:(t + 1) * B, :]
                    h, c = lstm_cell(gx_t, h, c)
                    if write_y:
                        y_sc[t * B:(t + 1) * B, :] = h
            else:
                # Spill gx to a 2-D scratch; bounded-unroll fori_loop with pl.ds reads.
                gx_sc[...] = gx

                def step(t, carry):
                    h_prev, c_prev = carry
                    start = pl.multiple_of(t * B, B)
                    gx_t = gx_sc[pl.ds(start, B), :]
                    h_new, c_new = lstm_cell(gx_t, h_prev, c_prev)
                    if write_y:
                        y_sc[pl.ds(start, B), :] = h_new
                    return h_new, c_new

                h, c = lax.fori_loop(0, S, step, (h, c), unroll=unroll)

            # Final state written once per layer (not every timestep).
            h_out_ref[layer] = h
            c_out_ref[layer] = c

    return kernel


def encoder_lstm(tokens, emb_table, layer_params):
    """tokens: (S, B) int32. emb_table: (V, E) f32.
    layer_params: tuple of (wih_t bf16 (D_in,4H), whh_t bf16 (H,4H), bias f32 (1,4H)).
    Returns (hidden, cell), each (num_layers, B, H) f32 — matching PyTorch LSTM."""
    S, B = tokens.shape
    V, E = emb_table.shape
    num_layers = len(layer_params)
    H = layer_params[0][1].shape[0]
    G = 4 * H
    SB = S * B

    # Keep gx as a loop value (pure vreg recurrence path) only when it is tiny;
    # otherwise use a 2-D scratch + bounded unroll.
    small_path = (SB * G * 4 <= 64 * 1024) and (S <= 64)
    unroll = min(8, S)

    kernel = _make_encoder_kernel(num_layers, S, B, E, H, small_path, unroll)

    inputs = [tokens.reshape(SB), emb_table]
    for wih_t, whh_t, bias in layer_params:
        inputs.extend([wih_t, whh_t, bias])

    in_specs = [pl.BlockSpec(memory_space=pltpu.MemorySpace.SMEM)] + \
               [pl.BlockSpec(memory_space=pltpu.MemorySpace.VMEM)
                for _ in inputs[1:]]

    scratch_shapes = [pltpu.VMEM((SB, E), jnp.float32),   # gathered embeddings
                      pltpu.VMEM((SB, H), jnp.float32)]   # inter-layer activations
    if not small_path:
        scratch_shapes.append(pltpu.VMEM((SB, G), jnp.float32))  # input-proj gates

    # Explicit VMEM budget derived from the actual footprint (+ headroom).
    param_bytes = sum(int(w.size) * w.dtype.itemsize
                      + int(u.size) * u.dtype.itemsize
                      + int(b.size) * b.dtype.itemsize
                      for w, u, b in layer_params)
    vmem_bytes = (int(emb_table.size) * 4
                  + param_bytes
                  + 2 * num_layers * B * H * 4                       # outputs
                  + SB * E * 4 + SB * H * 4
                  + (0 if small_path else SB * G * 4))
    vmem_limit = min(128 << 20, 2 * vmem_bytes + (8 << 20))

    flops = sum(2 * SB * (wih_t.shape[0] + H) * G for wih_t, _, _ in layer_params)
    transcendentals = num_layers * SB * 6 * H
    bytes_accessed = (4 * SB + int(emb_table.size) * 4 + param_bytes
                      + 2 * num_layers * B * H * 4)

    hidden, cell = pl.pallas_call(
        kernel,
        out_shape=(jax.ShapeDtypeStruct((num_layers, B, H), jnp.float32),
                   jax.ShapeDtypeStruct((num_layers, B, H), jnp.float32)),
        # No grid: all operands (a few hundred KiB here) are VMEM-resident for one call.
        in_specs=in_specs,
        out_specs=(pl.BlockSpec(memory_space=pltpu.MemorySpace.VMEM),
                   pl.BlockSpec(memory_space=pltpu.MemorySpace.VMEM)),
        scratch_shapes=scratch_shapes,
        compiler_params=pltpu.CompilerParams(vmem_limit_bytes=vmem_limit),
        cost_estimate=pl.CostEstimate(flops=flops,
                                      transcendentals=transcendentals,
                                      bytes_accessed=bytes_accessed),
    )(*inputs)
    return hidden, cell


@jax.jit
def _encoder_forward(embedding_table, layer_params, x_tokens):
    # Embedding gather + LSTM are fully fused into the Pallas kernel.
    return encoder_lstm(x_tokens, embedding_table, layer_params)


class EncoderPallas:
    """JAX/Pallas port of the PyTorch Encoder (eval mode: dropout = identity)."""

    def __init__(self, vocab_size, embedding_size, hidden_size, num_layers, p, key):
        self.hidden_size = hidden_size
        self.num_layers = num_layers
        self.p = p  # dropout prob; identity in eval mode

        keys = jax.random.split(key, 1 + 4 * num_layers)
        # nn.Embedding default init: N(0, 1)
        self.embedding = jax.random.normal(
            keys[0], (vocab_size, embedding_size), jnp.float32)

        # nn.LSTM default init: U(-1/sqrt(H), 1/sqrt(H)) for all params.
        # Transposes, b_ih + b_hh, and the bf16 weight cast are hoisted here.
        k = 1.0 / (hidden_size ** 0.5)
        params_f32, params_bf16 = [], []
        for layer in range(num_layers):
            d_in = embedding_size if layer == 0 else hidden_size
            kw = keys[1 + 4 * layer: 1 + 4 * (layer + 1)]
            w_ih = jax.random.uniform(kw[0], (4 * hidden_size, d_in),
                                      jnp.float32, -k, k)
            w_hh = jax.random.uniform(kw[1], (4 * hidden_size, hidden_size),
                                      jnp.float32, -k, k)
            b_ih = jax.random.uniform(kw[2], (4 * hidden_size,),
                                      jnp.float32, -k, k)
            b_hh = jax.random.uniform(kw[3], (4 * hidden_size,),
                                      jnp.float32, -k, k)
            bias = (b_ih + b_hh)[None, :]
            params_f32.append((w_ih.T, w_hh.T, bias))
            params_bf16.append((w_ih.T.astype(jnp.bfloat16),
                                w_hh.T.astype(jnp.bfloat16),
                                bias))
        self.layer_params_f32 = tuple(params_f32)     # for the pure-JAX reference
        self.layer_params = tuple(params_bf16)        # bf16 weights for the kernel

    def __call__(self, x_tokens):
        """x_tokens: (seq_len, batch) int32 token ids.
        Returns (hidden, cell), each (num_layers, batch, hidden_size)."""
        return _encoder_forward(self.embedding, self.layer_params, x_tokens)


def _lstm_reference(emb, layer_params):
    """Pure-JAX f32 reference (same math, PyTorch gate order i,f,g,o)."""
    S, B, _ = emb.shape
    inp = emb
    hs, cs = [], []
    for wih_t, whh_t, bias in layer_params:
        H = whh_t.shape[0]
        h = jnp.zeros((B, H), jnp.float32)
        c = jnp.zeros((B, H), jnp.float32)
        ys = []
        for t in range(S):
            gates = inp[t] @ wih_t + h @ whh_t + bias
            i_g = jax.nn.sigmoid(gates[:, 0 * H:1 * H])
            f_g = jax.nn.sigmoid(gates[:, 1 * H:2 * H])
            g_g = jnp.tanh(gates[:, 2 * H:3 * H])
            o_g = jax.nn.sigmoid(gates[:, 3 * H:4 * H])
            c = f_g * c + i_g * g_g
            h = o_g * jnp.tanh(c)
            ys.append(h)
        inp = jnp.stack(ys, axis=0)
        hs.append(h)
        cs.append(c)
    return jnp.stack(hs, axis=0), jnp.stack(cs, axis=0)


if __name__ == "__main__":
    VOCAB = 500          # matches en_vocab_500
    EMB = 32
    HID = 32
    LAYERS = 2
    P = 0.1
    SEQ = 8
    BATCH = 2

    key = jax.random.PRNGKey(0)
    k_param, k_tok = jax.random.split(key)

    enc = EncoderPallas(VOCAB, EMB, HID, LAYERS, P, k_param)

    x = jax.random.randint(k_tok, (SEQ, BATCH), 0, VOCAB, dtype=jnp.int32)

    hidden, cell = enc(x)
    hidden = jax.block_until_ready(hidden)
    cell = jax.block_until_ready(cell)

    assert hidden.shape == (LAYERS, BATCH, HID)
    assert cell.shape == (LAYERS, BATCH, HID)
    assert hidden.dtype == jnp.float32 and cell.dtype == jnp.float32

    # Correctness check against a pure-JAX f32 reference.  Tolerance covers the
    # deliberate bf16 MXU operands (rel err ~2e-3 per product, tanh-bounded states);
    # structural errors (gate order / bias handling) would be orders of magnitude larger.
    emb_ref = enc.embedding[x].astype(jnp.float32)
    h_ref, c_ref = _lstm_reference(emb_ref, enc.layer_params_f32)
    assert jnp.max(jnp.abs(hidden - h_ref)) < 5e-2, float(jnp.max(jnp.abs(hidden - h_ref)))
    assert jnp.max(jnp.abs(cell - c_ref)) < 5e-2, float(jnp.max(jnp.abs(cell - c_ref)))

    print("KERNEL_OK")
</pallas_src>

<mosaic_0001>
module attributes {stable_mosaic.version = 11 : i64} {
  func.func @kernel(%arg0: memref<16xi32, #tpu.memory_space<smem>>, %arg1: memref<500x32xf32, #tpu.memory_space<vmem>>, %arg2: memref<32x128xbf16, #tpu.memory_space<vmem>>, %arg3: memref<32x128xbf16, #tpu.memory_space<vmem>>, %arg4: memref<1x128xf32, #tpu.memory_space<vmem>>, %arg5: memref<32x128xbf16, #tpu.memory_space<vmem>>, %arg6: memref<32x128xbf16, #tpu.memory_space<vmem>>, %arg7: memref<1x128xf32, #tpu.memory_space<vmem>>, %arg8: memref<2x2x32xf32, #tpu.memory_space<vmem>>, %arg9: memref<2x2x32xf32, #tpu.memory_space<vmem>>, %arg10: memref<16x32xf32, #tpu.memory_space<vmem>>, %arg11: memref<16x32xf32, #tpu.memory_space<vmem>>) attributes {dimension_semantics = [], scalar_prefetch = 0 : i64, scratch_operands = 2 : i64, tpu.core_type = #tpu.core_type<tc>} {
    %c0 = arith.constant 0 : index
    %0 = memref.load %arg0[%c0] : memref<16xi32, #tpu.memory_space<smem>>
    %1 = arith.index_cast %0 : i32 to index
    %c0_0 = arith.constant 0 : index
    %2 = vector.load %arg1[%1, %c0_0] : memref<500x32xf32, #tpu.memory_space<vmem>>, vector<1x32xf32>
    %3 = vector.shape_cast %2 : vector<1x32xf32> to vector<32xf32>
    %c0_1 = arith.constant 0 : index
    %c0_2 = arith.constant 0 : index
    %4 = vector.load %arg10[%c0_1, %c0_2] : memref<16x32xf32, #tpu.memory_space<vmem>>, vector<1x32xf32>
    %5 = vector.shape_cast %4 : vector<1x32xf32> to vector<32xf32>
    %6 = vector.shape_cast %3 : vector<32xf32> to vector<1x32xf32>
    tpu.vector_store %arg10[%c0_1, %c0_2], %6 {strides = array<i32>} : memref<16x32xf32, #tpu.memory_space<vmem>>, vector<1x32xf32>,
    %c1 = arith.constant 1 : index
    %7 = memref.load %arg0[%c1] : memref<16xi32, #tpu.memory_space<smem>>
    %8 = arith.index_cast %7 : i32 to index
    %c0_3 = arith.constant 0 : index
    %9 = vector.load %arg1[%8, %c0_3] : memref<500x32xf32, #tpu.memory_space<vmem>>, vector<1x32xf32>
    %10 = vector.shape_cast %9 : vector<1x32xf32> to vector<32xf32>
    %c1_4 = arith.constant 1 : index
    %c0_5 = arith.constant 0 : index
    %11 = vector.load %arg10[%c1_4, %c0_5] : memref<16x32xf32, #tpu.memory_space<vmem>>, vector<1x32xf32>
    %12 = vector.shape_cast %11 : vector<1x32xf32> to vector<32xf32>
    %13 = vector.shape_cast %10 : vector<32xf32> to vector<1x32xf32>
    tpu.vector_store %arg10[%c1_4, %c0_5], %13 {strides = array<i32>} : memref<16x32xf32, #tpu.memory_space<vmem>>, vector<1x32xf32>,
    %c2 = arith.constant 2 : index
    %14 = memref.load %arg0[%c2] : memref<16xi32, #tpu.memory_space<smem>>
    %15 = arith.index_cast %14 : i32 to index
    %c0_6 = arith.constant 0 : index
    %16 = vector.load %arg1[%15, %c0_6] : memref<500x32xf32, #tpu.memory_space<vmem>>, vector<1x32xf32>
    %17 = vector.shape_cast %16 : vector<1x32xf32> to vector<32xf32>
    %c2_7 = arith.constant 2 : index
    %c0_8 = arith.constant 0 : index
    %18 = vector.load %arg10[%c2_7, %c0_8] : memref<16x32xf32, #tpu.memory_space<vmem>>, vector<1x32xf32>
    %19 = vector.shape_cast %18 : vector<1x32xf32> to vector<32xf32>
    %20 = vector.shape_cast %17 : vector<32xf32> to vector<1x32xf32>
    tpu.vector_store %arg10[%c2_7, %c0_8], %20 {strides = array<i32>} : memref<16x32xf32, #tpu.memory_space<vmem>>, vector<1x32xf32>,
    %c3 = arith.constant 3 : index
    %21 = memref.load %arg0[%c3] : memref<16xi32, #tpu.memory_space<smem>>
    %22 = arith.index_cast %21 : i32 to index
    %c0_9 = arith.constant 0 : index
    %23 = vector.load %arg1[%22, %c0_9] : memref<500x32xf32, #tpu.memory_space<vmem>>, vector<1x32xf32>
    %24 = vector.shape_cast %23 : vector<1x32xf32> to vector<32xf32>
    %c3_10 = arith.constant 3 : index
    %c0_11 = arith.constant 0 : index
    %25 = vector.load %arg10[%c3_10, %c0_11] : memref<16x32xf32, #tpu.memory_space<vmem>>, vector<1x32xf32>
    %26 = vector.shape_cast %25 : vector<1x32xf32> to vector<32xf32>
    %27 = vector.shape_cast %24 : vector<32xf32> to vector<1x32xf32>
    tpu.vector_store %arg10[%c3_10, %c0_11], %27 {strides = array<i32>} : memref<16x32xf32, #tpu.memory_space<vmem>>, vector<1x32xf32>,
    %c4 = arith.constant 4 : index
    %28 = memref.load %arg0[%c4] : memref<16xi32, #tpu.memory_space<smem>>
    %29 = arith.index_cast %28 : i32 to index
    %c0_12 = arith.constant 0 : index
    %30 = vector.load %arg1[%29, %c0_12] : memref<500x32xf32, #tpu.memory_space<vmem>>, vector<1x32xf32>
    %31 = vector.shape_cast %30 : vector<1x32xf32> to vector<32xf32>
    %c4_13 = arith.constant 4 : index
    %c0_14 = arith.constant 0 : index
    %32 = vector.load %arg10[%c4_13, %c0_14] : memref<16x32xf32, #tpu.memory_space<vmem>>, vector<1x32xf32>
    %33 = vector.shape_cast %32 : vector<1x32xf32> to vector<32xf32>
    %34 = vector.shape_cast %31 : vector<32xf32> to vector<1x32xf32>
    tpu.vector_store %arg10[%c4_13, %c0_14], %34 {strides = array<i32>} : memref<16x32xf32, #tpu.memory_space<vmem>>, vector<1x32xf32>,
    %c5 = arith.constant 5 : index
    %35 = memref.load %arg0[%c5] : memref<16xi32, #tpu.memory_space<smem>>
    %36 = arith.index_cast %35 : i32 to index
    %c0_15 = arith.constant 0 : index
    %37 = vector.load %arg1[%36, %c0_15] : memref<500x32xf32, #tpu.memory_space<vmem>>, vector<1x32xf32>
    %38 = vector.shape_cast %37 : vector<1x32xf32> to vector<32xf32>
    %c5_16 = arith.constant 5 : index
    %c0_17 = arith.constant 0 : index
    %39 = vector.load %arg10[%c5_16, %c0_17] : memref<16x32xf32, #tpu.memory_space<vmem>>, vector<1x32xf32>
    %40 = vector.shape_cast %39 : vector<1x32xf32> to vector<32xf32>
    %41 = vector.shape_cast %38 : vector<32xf32> to vector<1x32xf32>
    tpu.vector_store %arg10[%c5_16, %c0_17], %41 {strides = array<i32>} : memref<16x32xf32, #tpu.memory_space<vmem>>, vector<1x32xf32>,
    %c6 = arith.constant 6 : index
    %42 = memref.load %arg0[%c6] : memref<16xi32, #tpu.memory_space<smem>>
    %43 = arith.index_cast %42 : i32 to index
    %c0_18 = arith.constant 0 : index
    %44 = vector.load %arg1[%43, %c0_18] : memref<500x32xf32, #tpu.memory_space<vmem>>, vector<1x32xf32>
    %45 = vector.shape_cast %44 : vector<1x32xf32> to vector<32xf32>
    %c6_19 = arith.constant 6 : index
    %c0_20 = arith.constant 0 : index
    %46 = vector.load %arg10[%c6_19, %c0_20] : memref<16x32xf32, #tpu.memory_space<vmem>>, vector<1x32xf32>
    %47 = vector.shape_cast %46 : vector<1x32xf32> to vector<32xf32>
    %48 = vector.shape_cast %45 : vector<32xf32> to vector<1x32xf32>
    tpu.vector_store %arg10[%c6_19, %c0_20], %48 {strides = array<i32>} : memref<16x32xf32, #tpu.memory_space<vmem>>, vector<1x32xf32>,
    %c7 = arith.constant 7 : index
    %49 = memref.load %arg0[%c7] : memref<16xi32, #tpu.memory_space<smem>>
    %50 = arith.index_cast %49 : i32 to index
    %c0_21 = arith.constant 0 : index
    %51 = vector.load %arg1[%50, %c0_21] : memref<500x32xf32, #tpu.memory_space<vmem>>, vector<1x32xf32>
    %52 = vector.shape_cast %51 : vector<1x32xf32> to vector<32xf32>
    %c7_22 = arith.constant 7 : index
    %c0_23 = arith.constant 0 : index
    %53 = vector.load %arg10[%c7_22, %c0_23] : memref<16x32xf32, #tpu.memory_space<vmem>>, vector<1x32xf32>
    %54 = vector.shape_cast %53 : vector<1x32xf32> to vector<32xf32>
    %55 = vector.shape_cast %52 : vector<32xf32> to vector<1x32xf32>
    tpu.vector_store %arg10[%c7_22, %c0_23], %55 {strides = array<i32>} : memref<16x32xf32, #tpu.memory_space<vmem>>, vector<1x32xf32>,
    %c8 = arith.constant 8 : index
    %56 = memref.load %arg0[%c8] : memref<16xi32, #tpu.memory_space<smem>>
    %57 = arith.index_cast %56 : i32 to index
    %c0_24 = arith.constant 0 : index
    %58 = vector.load %arg1[%57, %c0_24] : memref<500x32xf32, #tpu.memory_space<vmem>>, vector<1x32xf32>
    %59 = vector.shape_cast %58 : vector<1x32xf32> to vector<32xf32>
    %c8_25 = arith.constant 8 : index
    %c0_26 = arith.constant 0 : index
    %60 = vector.load %arg10[%c8_25, %c0_26] : memref<16x32xf32, #tpu.memory_space<vmem>>, vector<1x32xf32>
    %61 = vector.shape_cast %60 : vector<1x32xf32> to vector<32xf32>
    %62 = vector.shape_cast %59 : vector<32xf32> to vector<1x32xf32>
    tpu.vector_store %arg10[%c8_25, %c0_26], %62 {strides = array<i32>} : memref<16x32xf32, #tpu.memory_space<vmem>>, vector<1x32xf32>,
    %c9 = arith.constant 9 : index
    %63 = memref.load %arg0[%c9] : memref<16xi32, #tpu.memory_space<smem>>
    %64 = arith.index_cast %63 : i32 to index
    %c0_27 = arith.constant 0 : index
    %65 = vector.load %arg1[%64, %c0_27] : memref<500x32xf32, #tpu.memory_space<vmem>>, vector<1x32xf32>
    %66 = vector.shape_cast %65 : vector<1x32xf32> to vector<32xf32>
    %c9_28 = arith.constant 9 : index
    %c0_29 = arith.constant 0 : index
    %67 = vector.load %arg10[%c9_28, %c0_29] : memref<16x32xf32, #tpu.memory_space<vmem>>, vector<1x32xf32>
    %68 = vector.shape_cast %67 : vector<1x32xf32> to vector<32xf32>
    %69 = vector.shape_cast %66 : vector<32xf32> to vector<1x32xf32>
    tpu.vector_store %arg10[%c9_28, %c0_29], %69 {strides = array<i32>} : memref<16x32xf32, #tpu.memory_space<vmem>>, vector<1x32xf32>,
    %c10 = arith.constant 10 : index
    %70 = memref.load %arg0[%c10] : memref<16xi32, #tpu.memory_space<smem>>
    %71 = arith.index_cast %70 : i32 to index
    %c0_30 = arith.constant 0 : index
    %72 = vector.load %arg1[%71, %c0_30] : memref<500x32xf32, #tpu.memory_space<vmem>>, vector<1x32xf32>
    %73 = vector.shape_cast %72 : vector<1x32xf32> to vector<32xf32>
    %c10_31 = arith.constant 10 : index
    %c0_32 = arith.constant 0 : index
    %74 = vector.load %arg10[%c10_31, %c0_32] : memref<16x32xf32, #tpu.memory_space<vmem>>, vector<1x32xf32>
    %75 = vector.shape_cast %74 : vector<1x32xf32> to vector<32xf32>
    %76 = vector.shape_cast %73 : vector<32xf32> to vector<1x32xf32>
    tpu.vector_store %arg10[%c10_31, %c0_32], %76 {strides = array<i32>} : memref<16x32xf32, #tpu.memory_space<vmem>>, vector<1x32xf32>,
    %c11 = arith.constant 11 : index
    %77 = memref.load %arg0[%c11] : memref<16xi32, #tpu.memory_space<smem>>
    %78 = arith.index_cast %77 : i32 to index
    %c0_33 = arith.constant 0 : index
    %79 = vector.load %arg1[%78, %c0_33] : memref<500x32xf32, #tpu.memory_space<vmem>>, vector<1x32xf32>
    %80 = vector.shape_cast %79 : vector<1x32xf32> to vector<32xf32>
    %c11_34 = arith.constant 11 : index
    %c0_35 = arith.constant 0 : index
    %81 = vector.load %arg10[%c11_34, %c0_35] : memref<16x32xf32, #tpu.memory_space<vmem>>, vector<1x32xf32>
    %82 = vector.shape_cast %81 : vector<1x32xf32> to vector<32xf32>
    %83 = vector.shape_cast %80 : vector<32xf32> to vector<1x32xf32>
    tpu.vector_store %arg10[%c11_34, %c0_35], %83 {strides = array<i32>} : memref<16x32xf32, #tpu.memory_space<vmem>>, vector<1x32xf32>,
    %c12 = arith.constant 12 : index
    %84 = memref.load %arg0[%c12] : memref<16xi32, #tpu.memory_space<smem>>
    %85 = arith.index_cast %84 : i32 to index
    %c0_36 = arith.constant 0 : index
    %86 = vector.load %arg1[%85, %c0_36] : memref<500x32xf32, #tpu.memory_space<vmem>>, vector<1x32xf32>
    %87 = vector.shape_cast %86 : vector<1x32xf32> to vector<32xf32>
    %c12_37 = arith.constant 12 : index
    %c0_38 = arith.constant 0 : index
    %88 = vector.load %arg10[%c12_37, %c0_38] : memref<16x32xf32, #tpu.memory_space<vmem>>, vector<1x32xf32>
    %89 = vector.shape_cast %88 : vector<1x32xf32> to vector<32xf32>
    %90 = vector.shape_cast %87 : vector<32xf32> to vector<1x32xf32>
    tpu.vector_store %arg10[%c12_37, %c0_38], %90 {strides = array<i32>} : memref<16x32xf32, #tpu.memory_space<vmem>>, vector<1x32xf32>,
    %c13 = arith.constant 13 : index
    %91 = memref.load %arg0[%c13] : memref<16xi32, #tpu.memory_space<smem>>
    %92 = arith.index_cast %91 : i32 to index
    %c0_39 = arith.constant 0 : index
    %93 = vector.load %arg1[%92, %c0_39] : memref<500x32xf32, #tpu.memory_space<vmem>>, vector<1x32xf32>
    %94 = vector.shape_cast %93 : vector<1x32xf32> to vector<32xf32>
    %c13_40 = arith.constant 13 : index
    %c0_41 = arith.constant 0 : index
    %95 = vector.load %arg10[%c13_40, %c0_41] : memref<16x32xf32, #tpu.memory_space<vmem>>, vector<1x32xf32>
    %96 = vector.shape_cast %95 : vector<1x32xf32> to vector<32xf32>
    %97 = vector.shape_cast %94 : vector<32xf32> to vector<1x32xf32>
    tpu.vector_store %arg10[%c13_40, %c0_41], %97 {strides = array<i32>} : memref<16x32xf32, #tpu.memory_space<vmem>>, vector<1x32xf32>,
    %c14 = arith.constant 14 : index
    %98 = memref.load %arg0[%c14] : memref<16xi32, #tpu.memory_space<smem>>
    %99 = arith.index_cast %98 : i32 to index
    %c0_42 = arith.constant 0 : index
    %100 = vector.load %arg1[%99, %c0_42] : memref<500x32xf32, #tpu.memory_space<vmem>>, vector<1x32xf32>
    %101 = vector.shape_cast %100 : vector<1x32xf32> to vector<32xf32>
    %c14_43 = arith.constant 14 : index
    %c0_44 = arith.constant 0 : index
    %102 = vector.load %arg10[%c14_43, %c0_44] : memref<16x32xf32, #tpu.memory_space<vmem>>, vector<1x32xf32>
    %103 = vector.shape_cast %102 : vector<1x32xf32> to vector<32xf32>
    %104 = vector.shape_cast %101 : vector<32xf32> to vector<1x32xf32>
    tpu.vector_store %arg10[%c14_43, %c0_44], %104 {strides = array<i32>} : memref<16x32xf32, #tpu.memory_space<vmem>>, vector<1x32xf32>,
    %c15 = arith.constant 15 : index
    %105 = memref.load %arg0[%c15] : memref<16xi32, #tpu.memory_space<smem>>
    %106 = arith.index_cast %105 : i32 to index
    %c0_45 = arith.constant 0 : index
    %107 = vector.load %arg1[%106, %c0_45] : memref<500x32xf32, #tpu.memory_space<vmem>>, vector<1x32xf32>
    %108 = vector.shape_cast %107 : vector<1x32xf32> to vector<32xf32>
    %c15_46 = arith.constant 15 : index
    %c0_47 = arith.constant 0 : index
    %109 = vector.load %arg10[%c15_46, %c0_47] : memref<16x32xf32, #tpu.memory_space<vmem>>, vector<1x32xf32>
    %110 = vector.shape_cast %109 : vector<1x32xf32> to vector<32xf32>
    %111 = vector.shape_cast %108 : vector<32xf32> to vector<1x32xf32>
    tpu.vector_store %arg10[%c15_46, %c0_47], %111 {strides = array<i32>} : memref<16x32xf32, #tpu.memory_space<vmem>>, vector<1x32xf32>,
    %c0_48 = arith.constant 0 : index
    %c0_49 = arith.constant 0 : index
    %112 = vector.load %arg10[%c0_48, %c0_49] : memref<16x32xf32, #tpu.memory_space<vmem>>, vector<16x32xf32>
    %113 = arith.truncf %112 : vector<16x32xf32> to vector<16x32xbf16>
    %c0_50 = arith.constant 0 : index
    %c0_51 = arith.constant 0 : index
    %114 = vector.load %arg2[%c0_50, %c0_51] : memref<32x128xbf16, #tpu.memory_space<vmem>>, vector<32x128xbf16>
    %cst = arith.constant dense<0.000000e+00> : vector<16x128xf32>
    %115 = tpu.matmul %113, %114, %cst {dimension_numbers = #tpu.dot_dimension_numbers<[1], [0], [0], [1], [0, 0, 1, 1], [], []>} : vector<16x32xbf16>, vector<32x128xbf16>, vector<16x128xf32> -> vector<16x128xf32>
    %c0_52 = arith.constant 0 : index
    %c0_53 = arith.constant 0 : index
    %116 = vector.load %arg4[%c0_52, %c0_53] : memref<1x128xf32, #tpu.memory_space<vmem>>, vector<1x128xf32>
    %117 = vector.broadcast %116 : vector<1x128xf32> to vector<16x128xf32>
    %118 = arith.addf %115, %117 : vector<16x128xf32>
    %c0_54 = arith.constant 0 : index
    %c0_55 = arith.constant 0 : index
    %119 = vector.load %arg3[%c0_54, %c0_55] : memref<32x128xbf16, #tpu.memory_space<vmem>>, vector<32x128xbf16>
    %cst_56 = arith.constant 0.000000e+00 : f32
    %120 = vector.broadcast %cst_56 : f32 to vector<2x32xf32>
    %cst_57 = arith.constant 0.000000e+00 : f32
    %121 = vector.broadcast %cst_57 : f32 to vector<2x32xf32>
    %122 = vector.extract_strided_slice %118 {offsets = [0, 0], sizes = [2, 128], strides = [1, 1]} : vector<16x128xf32> to vector<2x128xf32>
    %123 = arith.truncf %120 : vector<2x32xf32> to vector<2x32xbf16>
    %cst_58 = arith.constant dense<0.000000e+00> : vector<2x128xf32>
    %124 = tpu.matmul %123, %119, %cst_58 {dimension_numbers = #tpu.dot_dimension_numbers<[1], [0], [0], [1], [0, 0, 1, 1], [], []>} : vector<2x32xbf16>, vector<32x128xbf16>, vector<2x128xf32> -> vector<2x128xf32>
    %125 = arith.addf %122, %124 : vector<2x128xf32>
    %126 = arith.negf %125 : vector<2x128xf32>
    %127 = math.exp %126 : vector<2x128xf32>
    %cst_59 = arith.constant 1.000000e+00 : f32
    %128 = vector.broadcast %cst_59 : f32 to vector<2x128xf32>
    %129 = arith.addf %128, %127 : vector<2x128xf32>
    %130 = arith.divf %128, %129 : vector<2x128xf32>
    %131 = vector.extract_strided_slice %130 {offsets = [0, 0], sizes = [2, 32], strides = [1, 1]} : vector<2x128xf32> to vector<2x32xf32>
    %132 = vector.extract_strided_slice %130 {offsets = [0, 32], sizes = [2, 32], strides = [1, 1]} : vector<2x128xf32> to vector<2x32xf32>
    %133 = vector.extract_strided_slice %130 {offsets = [0, 96], sizes = [2, 32], strides = [1, 1]} : vector<2x128xf32> to vector<2x32xf32>
    %134 = vector.extract_strided_slice %125 {offsets = [0, 64], sizes = [2, 32], strides = [1, 1]} : vector<2x128xf32> to vector<2x32xf32>
    %135 = math.tanh %134 : vector<2x32xf32>
    %136 = arith.mulf %132, %121 : vector<2x32xf32>
    %137 = arith.mulf %131, %135 : vector<2x32xf32>
    %138 = arith.addf %136, %137 : vector<2x32xf32>
    %139 = math.tanh %138 : vector<2x32xf32>
    %140 = arith.mulf %133, %139 : vector<2x32xf32>
    %c0_60 = arith.constant 0 : index
    %c0_61 = arith.constant 0 : index
    %141 = vector.load %arg11[%c0_60, %c0_61] : memref<16x32xf32, #tpu.memory_space<vmem>>, vector<2x32xf32>
    tpu.vector_store %arg11[%c0_60, %c0_61], %140 {strides = array<i32>} : memref<16x32xf32, #tpu.memory_space<vmem>>, vector<2x32xf32>,
    %142 = vector.extract_strided_slice %118 {offsets = [2, 0], sizes = [2, 128], strides = [1, 1]} : vector<16x128xf32> to vector<2x128xf32>
    %143 = arith.truncf %140 : vector<2x32xf32> to vector<2x32xbf16>
    %cst_62 = arith.constant dense<0.000000e+00> : vector<2x128xf32>
    %144 = tpu.matmul %143, %119, %cst_62 {dimension_numbers = #tpu.dot_dimension_numbers<[1], [0], [0], [1], [0, 0, 1, 1], [], []>} : vector<2x32xbf16>, vector<32x128xbf16>, vector<2x128xf32> -> vector<2x128xf32>
    %145 = arith.addf %142, %144 : vector<2x128xf32>
    %146 = arith.negf %145 : vector<2x128xf32>
    %147 = math.exp %146 : vector<2x128xf32>
    %cst_63 = arith.constant 1.000000e+00 : f32
    %148 = vector.broadcast %cst_63 : f32 to vector<2x128xf32>
    %149 = arith.addf %148, %147 : vector<2x128xf32>
    %150 = arith.divf %148, %149 : vector<2x128xf32>
    %151 = vector.extract_strided_slice %150 {offsets = [0, 0], sizes = [2, 32], strides = [1, 1]} : vector<2x128xf32> to vector<2x32xf32>
    %152 = vector.extract_strided_slice %150 {offsets = [0, 32], sizes = [2, 32], strides = [1, 1]} : vector<2x128xf32> to vector<2x32xf32>
    %153 = vector.extract_strided_slice %150 {offsets = [0, 96], sizes = [2, 32], strides = [1, 1]} : vector<2x128xf32> to vector<2x32xf32>
    %154 = vector.extract_strided_slice %145 {offsets = [0, 64], sizes = [2, 32], strides = [1, 1]} : vector<2x128xf32> to vector<2x32xf32>
    %155 = math.tanh %154 : vector<2x32xf32>
    %156 = arith.mulf %152, %138 : vector<2x32xf32>
    %157 = arith.mulf %151, %155 : vector<2x32xf32>
    %158 = arith.addf %156, %157 : vector<2x32xf32>
    %159 = math.tanh %158 : vector<2x32xf32>
    %160 = arith.mulf %153, %159 : vector<2x32xf32>
    %c2_64 = arith.constant 2 : index
    %c0_65 = arith.constant 0 : index
    %161 = vector.load %arg11[%c2_64, %c0_65] : memref<16x32xf32, #tpu.memory_space<vmem>>, vector<2x32xf32>
    tpu.vector_store %arg11[%c2_64, %c0_65], %160 {strides = array<i32>} : memref<16x32xf32, #tpu.memory_space<vmem>>, vector<2x32xf32>,
    %162 = vector.extract_strided_slice %118 {offsets = [4, 0], sizes = [2, 128], strides = [1, 1]} : vector<16x128xf32> to vector<2x128xf32>
    %163 = arith.truncf %160 : vector<2x32xf32> to vector<2x32xbf16>
    %cst_66 = arith.constant dense<0.000000e+00> : vector<2x128xf32>
    %164 = tpu.matmul %163, %119, %cst_66 {dimension_numbers = #tpu.dot_dimension_numbers<[1], [0], [0], [1], [0, 0, 1, 1], [], []>} : vector<2x32xbf16>, vector<32x128xbf16>, vector<2x128xf32> -> vector<2x128xf32>
    %165 = arith.addf %162, %164 : vector<2x128xf32>
    %166 = arith.negf %165 : vector<2x128xf32>
    %167 = math.exp %166 : vector<2x128xf32>
    %cst_67 = arith.constant 1.000000e+00 : f32
    %168 = vector.broadcast %cst_67 : f32 to vector<2x128xf32>
    %169 = arith.addf %168, %167 : vector<2x128xf32>
    %170 = arith.divf %168, %169 : vector<2x128xf32>
    %171 = vector.extract_strided_slice %170 {offsets = [0, 0], sizes = [2, 32], strides = [1, 1]} : vector<2x128xf32> to vector<2x32xf32>
    %172 = vector.extract_strided_slice %170 {offsets = [0, 32], sizes = [2, 32], strides = [1, 1]} : vector<2x128xf32> to vector<2x32xf32>
    %173 = vector.extract_strided_slice %170 {offsets = [0, 96], sizes = [2, 32], strides = [1, 1]} : vector<2x128xf32> to vector<2x32xf32>
    %174 = vector.extract_strided_slice %165 {offsets = [0, 64], sizes = [2, 32], strides = [1, 1]} : vector<2x128xf32> to vector<2x32xf32>
    %175 = math.tanh %174 : vector<2x32xf32>
    %176 = arith.mulf %172, %158 : vector<2x32xf32>
    %177 = arith.mulf %171, %175 : vector<2x32xf32>
    %178 = arith.addf %176, %177 : vector<2x32xf32>
    %179 = math.tanh %178 : vector<2x32xf32>
    %180 = arith.mulf %173, %179 : vector<2x32xf32>
    %c4_68 = arith.constant 4 : index
    %c0_69 = arith.constant 0 : index
    %181 = vector.load %arg11[%c4_68, %c0_69] : memref<16x32xf32, #tpu.memory_space<vmem>>, vector<2x32xf32>
    tpu.vector_store %arg11[%c4_68, %c0_69], %180 {strides = array<i32>} : memref<16x32xf32, #tpu.memory_space<vmem>>, vector<2x32xf32>,
    %182 = vector.extract_strided_slice %118 {offsets = [6, 0], sizes = [2, 128], strides = [1, 1]} : vector<16x128xf32> to vector<2x128xf32>
    %183 = arith.truncf %180 : vector<2x32xf32> to vector<2x32xbf16>
    %cst_70 = arith.constant dense<0.000000e+00> : vector<2x128xf32>
    %184 = tpu.matmul %183, %119, %cst_70 {dimension_numbers = #tpu.dot_dimension_numbers<[1], [0], [0], [1], [0, 0, 1, 1], [], []>} : vector<2x32xbf16>, vector<32x128xbf16>, vector<2x128xf32> -> vector<2x128xf32>
    %185 = arith.addf %182, %184 : vector<2x128xf32>
    %186 = arith.negf %185 : vector<2x128xf32>
    %187 = math.exp %186 : vector<2x128xf32>
    %cst_71 = arith.constant 1.000000e+00 : f32
    %188 = vector.broadcast %cst_71 : f32 to vector<2x128xf32>
    %189 = arith.addf %188, %187 : vector<2x128xf32>
    %190 = arith.divf %188, %189 : vector<2x128xf32>
    %191 = vector.extract_strided_slice %190 {offsets = [0, 0], sizes = [2, 32], strides = [1, 1]} : vector<2x128xf32> to vector<2x32xf32>
    %192 = vector.extract_strided_slice %190 {offsets = [0, 32], sizes = [2, 32], strides = [1, 1]} : vector<2x128xf32> to vector<2x32xf32>
    %193 = vector.extract_strided_slice %190 {offsets = [0, 96], sizes = [2, 32], strides = [1, 1]} : vector<2x128xf32> to vector<2x32xf32>
    %194 = vector.extract_strided_slice %185 {offsets = [0, 64], sizes = [2, 32], strides = [1, 1]} : vector<2x128xf32> to vector<2x32xf32>
    %195 = math.tanh %194 : vector<2x32xf32>
    %196 = arith.mulf %192, %178 : vector<2x32xf32>
    %197 = arith.mulf %191, %195 : vector<2x32xf32>
    %198 = arith.addf %196, %197 : vector<2x32xf32>
    %199 = math.tanh %198 : vector<2x32xf32>
    %200 = arith.mulf %193, %199 : vector<2x32xf32>
    %c6_72 = arith.constant 6 : index
    %c0_73 = arith.constant 0 : index
    %201 = vector.load %arg11[%c6_72, %c0_73] : memref<16x32xf32, #tpu.memory_space<vmem>>, vector<2x32xf32>
    tpu.vector_store %arg11[%c6_72, %c0_73], %200 {strides = array<i32>} : memref<16x32xf32, #tpu.memory_space<vmem>>, vector<2x32xf32>,
    %202 = vector.extract_strided_slice %118 {offsets = [8, 0], sizes = [2, 128], strides = [1, 1]} : vector<16x128xf32> to vector<2x128xf32>
    %203 = arith.truncf %200 : vector<2x32xf32> to vector<2x32xbf16>
    %cst_74 = arith.constant dense<0.000000e+00> : vector<2x128xf32>
    %204 = tpu.matmul %203, %119, %cst_74 {dimension_numbers = #tpu.dot_dimension_numbers<[1], [0], [0], [1], [0, 0, 1, 1], [], []>} : vector<2x32xbf16>, vector<32x128xbf16>, vector<2x128xf32> -> vector<2x128xf32>
    %205 = arith.addf %202, %204 : vector<2x128xf32>
    %206 = arith.negf %205 : vector<2x128xf32>
    %207 = math.exp %206 : vector<2x128xf32>
    %cst_75 = arith.constant 1.000000e+00 : f32
    %208 = vector.broadcast %cst_75 : f32 to vector<2x128xf32>
    %209 = arith.addf %208, %207 : vector<2x128xf32>
    %210 = arith.divf %208, %209 : vector<2x128xf32>
    %211 = vector.extract_strided_slice %210 {offsets = [0, 0], sizes = [2, 32], strides = [1, 1]} : vector<2x128xf32> to vector<2x32xf32>
    %212 = vector.extract_strided_slice %210 {offsets = [0, 32], sizes = [2, 32], strides = [1, 1]} : vector<2x128xf32> to vector<2x32xf32>
    %213 = vector.extract_strided_slice %210 {offsets = [0, 96], sizes = [2, 32], strides = [1, 1]} : vector<2x128xf32> to vector<2x32xf32>
    %214 = vector.extract_strided_slice %205 {offsets = [0, 64], sizes = [2, 32], strides = [1, 1]} : vector<2x128xf32> to vector<2x32xf32>
    %215 = math.tanh %214 : vector<2x32xf32>
    %216 = arith.mulf %212, %198 : vector<2x32xf32>
    %217 = arith.mulf %211, %215 : vector<2x32xf32>
    %218 = arith.addf %216, %217 : vector<2x32xf32>
    %219 = math.tanh %218 : vector<2x32xf32>
    %220 = arith.mulf %213, %219 : vector<2x32xf32>
    %c8_76 = arith.constant 8 : index
    %c0_77 = arith.constant 0 : index
    %221 = vector.load %arg11[%c8_76, %c0_77] : memref<16x32xf32, #tpu.memory_space<vmem>>, vector<2x32xf32>
    tpu.vector_store %arg11[%c8_76, %c0_77], %220 {strides = array<i32>} : memref<16x32xf32, #tpu.memory_space<vmem>>, vector<2x32xf32>,
    %222 = vector.extract_strided_slice %118 {offsets = [10, 0], sizes = [2, 128], strides = [1, 1]} : vector<16x128xf32> to vector<2x128xf32>
    %223 = arith.truncf %220 : vector<2x32xf32> to vector<2x32xbf16>
    %cst_78 = arith.constant dense<0.000000e+00> : vector<2x128xf32>
    %224 = tpu.matmul %223, %119, %cst_78 {dimension_numbers = #tpu.dot_dimension_numbers<[1], [0], [0], [1], [0, 0, 1, 1], [], []>} : vector<2x32xbf16>, vector<32x128xbf16>, vector<2x128xf32> -> vector<2x128xf32>
    %225 = arith.addf %222, %224 : vector<2x128xf32>
    %226 = arith.negf %225 : vector<2x128xf32>
    %227 = math.exp %226 : vector<2x128xf32>
    %cst_79 = arith.constant 1.000000e+00 : f32
    %228 = vector.broadcast %cst_79 : f32 to vector<2x128xf32>
    %229 = arith.addf %228, %227 : vector<2x128xf32>
    %230 = arith.divf %228, %229 : vector<2x128xf32>
    %231 = vector.extract_strided_slice %230 {offsets = [0, 0], sizes = [2, 32], strides = [1, 1]} : vector<2x128xf32> to vector<2x32xf32>
    %232 = vector.extract_strided_slice %230 {offsets = [0, 32], sizes = [2, 32], strides = [1, 1]} : vector<2x128xf32> to vector<2x32xf32>
    %233 = vector.extract_strided_slice %230 {offsets = [0, 96], sizes = [2, 32], strides = [1, 1]} : vector<2x128xf32> to vector<2x32xf32>
    %234 = vector.extract_strided_slice %225 {offsets = [0, 64], sizes = [2, 32], strides = [1, 1]} : vector<2x128xf32> to vector<2x32xf32>
    %235 = math.tanh %234 : vector<2x32xf32>
    %236 = arith.mulf %232, %218 : vector<2x32xf32>
    %237 = arith.mulf %231, %235 : vector<2x32xf32>
    %238 = arith.addf %236, %237 : vector<2x32xf32>
    %239 = math.tanh %238 : vector<2x32xf32>
    %240 = arith.mulf %233, %239 : vector<2x32xf32>
    %c10_80 = arith.constant 10 : index
    %c0_81 = arith.constant 0 : index
    %241 = vector.load %arg11[%c10_80, %c0_81] : memref<16x32xf32, #tpu.memory_space<vmem>>, vector<2x32xf32>
    tpu.vector_store %arg11[%c10_80, %c0_81], %240 {strides = array<i32>} : memref<16x32xf32, #tpu.memory_space<vmem>>, vector<2x32xf32>,
    %242 = vector.extract_strided_slice %118 {offsets = [12, 0], sizes = [2, 128], strides = [1, 1]} : vector<16x128xf32> to vector<2x128xf32>
    %243 = arith.truncf %240 : vector<2x32xf32> to vector<2x32xbf16>
    %cst_82 = arith.constant dense<0.000000e+00> : vector<2x128xf32>
    %244 = tpu.matmul %243, %119, %cst_82 {dimension_numbers = #tpu.dot_dimension_numbers<[1], [0], [0], [1], [0, 0, 1, 1], [], []>} : vector<2x32xbf16>, vector<32x128xbf16>, vector<2x128xf32> -> vector<2x128xf32>
    %245 = arith.addf %242, %244 : vector<2x128xf32>
    %246 = arith.negf %245 : vector<2x128xf32>
    %247 = math.exp %246 : vector<2x128xf32>
    %cst_83 = arith.constant 1.000000e+00 : f32
    %248 = vector.broadcast %cst_83 : f32 to vector<2x128xf32>
    %249 = arith.addf %248, %247 : vector<2x128xf32>
    %250 = arith.divf %248, %249 : vector<2x128xf32>
    %251 = vector.extract_strided_slice %250 {offsets = [0, 0], sizes = [2, 32], strides = [1, 1]} : vector<2x128xf32> to vector<2x32xf32>
    %252 = vector.extract_strided_slice %250 {offsets = [0, 32], sizes = [2, 32], strides = [1, 1]} : vector<2x128xf32> to vector<2x32xf32>
    %253 = vector.extract_strided_slice %250 {offsets = [0, 96], sizes = [2, 32], strides = [1, 1]} : vector<2x128xf32> to vector<2x32xf32>
    %254 = vector.extract_strided_slice %245 {offsets = [0, 64], sizes = [2, 32], strides = [1, 1]} : vector<2x128xf32> to vector<2x32xf32>
    %255 = math.tanh %254 : vector<2x32xf32>
    %256 = arith.mulf %252, %238 : vector<2x32xf32>
    %257 = arith.mulf %251, %255 : vector<2x32xf32>
    %258 = arith.addf %256, %257 : vector<2x32xf32>
    %259 = math.tanh %258 : vector<2x32xf32>
    %260 = arith.mulf %253, %259 : vector<2x32xf32>
    %c12_84 = arith.constant 12 : index
    %c0_85 = arith.constant 0 : index
    %261 = vector.load %arg11[%c12_84, %c0_85] : memref<16x32xf32, #tpu.memory_space<vmem>>, vector<2x32xf32>
    tpu.vector_store %arg11[%c12_84, %c0_85], %260 {strides = array<i32>} : memref<16x32xf32, #tpu.memory_space<vmem>>, vector<2x32xf32>,
    %262 = vector.extract_strided_slice %118 {offsets = [14, 0], sizes = [2, 128], strides = [1, 1]} : vector<16x128xf32> to vector<2x128xf32>
    %263 = arith.truncf %260 : vector<2x32xf32> to vector<2x32xbf16>
    %cst_86 = arith.constant dense<0.000000e+00> : vector<2x128xf32>
    %264 = tpu.matmul %263, %119, %cst_86 {dimension_numbers = #tpu.dot_dimension_numbers<[1], [0], [0], [1], [0, 0, 1, 1], [], []>} : vector<2x32xbf16>, vector<32x128xbf16>, vector<2x128xf32> -> vector<2x128xf32>
    %265 = arith.addf %262, %264 : vector<2x128xf32>
    %266 = arith.negf %265 : vector<2x128xf32>
    %267 = math.exp %266 : vector<2x128xf32>
    %cst_87 = arith.constant 1.000000e+00 : f32
    %268 = vector.broadcast %cst_87 : f32 to vector<2x128xf32>
    %269 = arith.addf %268, %267 : vector<2x128xf32>
    %270 = arith.divf %268, %269 : vector<2x128xf32>
    %271 = vector.extract_strided_slice %270 {offsets = [0, 0], sizes = [2, 32], strides = [1, 1]} : vector<2x128xf32> to vector<2x32xf32>
    %272 = vector.extract_strided_slice %270 {offsets = [0, 32], sizes = [2, 32], strides = [1, 1]} : vector<2x128xf32> to vector<2x32xf32>
    %273 = vector.extract_strided_slice %270 {offsets = [0, 96], sizes = [2, 32], strides = [1, 1]} : vector<2x128xf32> to vector<2x32xf32>
    %274 = vector.extract_strided_slice %265 {offsets = [0, 64], sizes = [2, 32], strides = [1, 1]} : vector<2x128xf32> to vector<2x32xf32>
    %275 = math.tanh %274 : vector<2x32xf32>
    %276 = arith.mulf %272, %258 : vector<2x32xf32>
    %277 = arith.mulf %271, %275 : vector<2x32xf32>
    %278 = arith.addf %276, %277 : vector<2x32xf32>
    %279 = math.tanh %278 : vector<2x32xf32>
    %280 = arith.mulf %273, %279 : vector<2x32xf32>
    %c14_88 = arith.constant 14 : index
    %c0_89 = arith.constant 0 : index
    %281 = vector.load %arg11[%c14_88, %c0_89] : memref<16x32xf32, #tpu.memory_space<vmem>>, vector<2x32xf32>
    tpu.vector_store %arg11[%c14_88, %c0_89], %280 {strides = array<i32>} : memref<16x32xf32, #tpu.memory_space<vmem>>, vector<2x32xf32>,
    %c0_90 = arith.constant 0 : index
    %c0_91 = arith.constant 0 : index
    %c0_92 = arith.constant 0 : index
    %282 = vector.load %arg8[%c0_90, %c0_91, %c0_92] : memref<2x2x32xf32, #tpu.memory_space<vmem>>, vector<1x2x32xf32>
    %283 = vector.shape_cast %282 : vector<1x2x32xf32> to vector<2x32xf32>
    %284 = vector.shape_cast %280 : vector<2x32xf32> to vector<1x2x32xf32>
    tpu.vector_store %arg8[%c0_90, %c0_91, %c0_92], %284 {strides = array<i32>} : memref<2x2x32xf32, #tpu.memory_space<vmem>>, vector<1x2x32xf32>,
    %c0_93 = arith.constant 0 : index
    %c0_94 = arith.constant 0 : index
    %c0_95 = arith.constant 0 : index
    %285 = vector.load %arg9[%c0_93, %c0_94, %c0_95] : memref<2x2x32xf32, #tpu.memory_space<vmem>>, vector<1x2x32xf32>
    %286 = vector.shape_cast %285 : vector<1x2x32xf32> to vector<2x32xf32>
    %287 = vector.shape_cast %278 : vector<2x32xf32> to vector<1x2x32xf32>
    tpu.vector_store %arg9[%c0_93, %c0_94, %c0_95], %287 {strides = array<i32>} : memref<2x2x32xf32, #tpu.memory_space<vmem>>, vector<1x2x32xf32>,
    %c0_96 = arith.constant 0 : index
    %c0_97 = arith.constant 0 : index
    %288 = vector.load %arg11[%c0_96, %c0_97] : memref<16x32xf32, #tpu.memory_space<vmem>>, vector<16x32xf32>
    %289 = arith.truncf %288 : vector<16x32xf32> to vector<16x32xbf16>
    %c0_98 = arith.constant 0 : index
    %c0_99 = arith.constant 0 : index
    %290 = vector.load %arg5[%c0_98, %c0_99] : memref<32x128xbf16, #tpu.memory_space<vmem>>, vector<32x128xbf16>
    %cst_100 = arith.constant dense<0.000000e+00> : vector<16x128xf32>
    %291 = tpu.matmul %289, %290, %cst_100 {dimension_numbers = #tpu.dot_dimension_numbers<[1], [0], [0], [1], [0, 0, 1, 1], [], []>} : vector<16x32xbf16>, vector<32x128xbf16>, vector<16x128xf32> -> vector<16x128xf32>
    %c0_101 = arith.constant 0 : index
    %c0_102 = arith.constant 0 : index
    %292 = vector.load %arg7[%c0_101, %c0_102] : memref<1x128xf32, #tpu.memory_space<vmem>>, vector<1x128xf32>
    %293 = vector.broadcast %292 : vector<1x128xf32> to vector<16x128xf32>
    %294 = arith.addf %291, %293 : vector<16x128xf32>
    %c0_103 = arith.constant 0 : index
    %c0_104 = arith.constant 0 : index
    %295 = vector.load %arg6[%c0_103, %c0_104] : memref<32x128xbf16, #tpu.memory_space<vmem>>, vector<32x128xbf16>
    %cst_105 = arith.constant 0.000000e+00 : f32
    %296 = vector.broadcast %cst_105 : f32 to vector<2x32xf32>
    %cst_106 = arith.constant 0.000000e+00 : f32
    %297 = vector.broadcast %cst_106 : f32 to vector<2x32xf32>
    %298 = vector.extract_strided_slice %294 {offsets = [0, 0], sizes = [2, 128], strides = [1, 1]} : vector<16x128xf32> to vector<2x128xf32>
    %299 = arith.truncf %296 : vector<2x32xf32> to vector<2x32xbf16>
    %cst_107 = arith.constant dense<0.000000e+00> : vector<2x128xf32>
    %300 = tpu.matmul %299, %295, %cst_107 {dimension_numbers = #tpu.dot_dimension_numbers<[1], [0], [0], [1], [0, 0, 1, 1], [], []>} : vector<2x32xbf16>, vector<32x128xbf16>, vector<2x128xf32> -> vector<2x128xf32>
    %301 = arith.addf %298, %300 : vector<2x128xf32>
    %302 = arith.negf %301 : vector<2x128xf32>
    %303 = math.exp %302 : vector<2x128xf32>
    %cst_108 = arith.constant 1.000000e+00 : f32
    %304 = vector.broadcast %cst_108 : f32 to vector<2x128xf32>
    %305 = arith.addf %304, %303 : vector<2x128xf32>
    %306 = arith.divf %304, %305 : vector<2x128xf32>
    %307 = vector.extract_strided_slice %306 {offsets = [0, 0], sizes = [2, 32], strides = [1, 1]} : vector<2x128xf32> to vector<2x32xf32>
    %308 = vector.extract_strided_slice %306 {offsets = [0, 32], sizes = [2, 32], strides = [1, 1]} : vector<2x128xf32> to vector<2x32xf32>
    %309 = vector.extract_strided_slice %306 {offsets = [0, 96], sizes = [2, 32], strides = [1, 1]} : vector<2x128xf32> to vector<2x32xf32>
    %310 = vector.extract_strided_slice %301 {offsets = [0, 64], sizes = [2, 32], strides = [1, 1]} : vector<2x128xf32> to vector<2x32xf32>
    %311 = math.tanh %310 : vector<2x32xf32>
    %312 = arith.mulf %308, %297 : vector<2x32xf32>
    %313 = arith.mulf %307, %311 : vector<2x32xf32>
    %314 = arith.addf %312, %313 : vector<2x32xf32>
    %315 = math.tanh %314 : vector<2x32xf32>
    %316 = arith.mulf %309, %315 : vector<2x32xf32>
    %317 = vector.extract_strided_slice %294 {offsets = [2, 0], sizes = [2, 128], strides = [1, 1]} : vector<16x128xf32> to vector<2x128xf32>
    %318 = arith.truncf %316 : vector<2x32xf32> to vector<2x32xbf16>
    %cst_109 = arith.constant dense<0.000000e+00> : vector<2x128xf32>
    %319 = tpu.matmul %318, %295, %cst_109 {dimension_numbers = #tpu.dot_dimension_numbers<[1], [0], [0], [1], [0, 0, 1, 1], [], []>} : vector<2x32xbf16>, vector<32x128xbf16>, vector<2x128xf32> -> vector<2x128xf32>
    %320 = arith.addf %317, %319 : vector<2x128xf32>
    %321 = arith.negf %320 : vector<2x128xf32>
    %322 = math.exp %321 : vector<2x128xf32>
    %cst_110 = arith.constant 1.000000e+00 : f32
    %323 = vector.broadcast %cst_110 : f32 to vector<2x128xf32>
    %324 = arith.addf %323, %322 : vector<2x128xf32>
    %325 = arith.divf %323, %324 : vector<2x128xf32>
    %326 = vector.extract_strided_slice %325 {offsets = [0, 0], sizes = [2, 32], strides = [1, 1]} : vector<2x128xf32> to vector<2x32xf32>
    %327 = vector.extract_strided_slice %325 {offsets = [0, 32], sizes = [2, 32], strides = [1, 1]} : vector<2x128xf32> to vector<2x32xf32>
    %328 = vector.extract_strided_slice %325 {offsets = [0, 96], sizes = [2, 32], strides = [1, 1]} : vector<2x128xf32> to vector<2x32xf32>
    %329 = vector.extract_strided_slice %320 {offsets = [0, 64], sizes = [2, 32], strides = [1, 1]} : vector<2x128xf32> to vector<2x32xf32>
    %330 = math.tanh %329 : vector<2x32xf32>
    %331 = arith.mulf %327, %314 : vector<2x32xf32>
    %332 = arith.mulf %326, %330 : vector<2x32xf32>
    %333 = arith.addf %331, %332 : vector<2x32xf32>
    %334 = math.tanh %333 : vector<2x32xf32>
    %335 = arith.mulf %328, %334 : vector<2x32xf32>
    %336 = vector.extract_strided_slice %294 {offsets = [4, 0], sizes = [2, 128], strides = [1, 1]} : vector<16x128xf32> to vector<2x128xf32>
    %337 = arith.truncf %335 : vector<2x32xf32> to vector<2x32xbf16>
    %cst_111 = arith.constant dense<0.000000e+00> : vector<2x128xf32>
    %338 = tpu.matmul %337, %295, %cst_111 {dimension_numbers = #tpu.dot_dimension_numbers<[1], [0], [0], [1], [0, 0, 1, 1], [], []>} : vector<2x32xbf16>, vector<32x128xbf16>, vector<2x128xf32> -> vector<2x128xf32>
    %339 = arith.addf %336, %338 : vector<2x128xf32>
    %340 = arith.negf %339 : vector<2x128xf32>
    %341 = math.exp %340 : vector<2x128xf32>
    %cst_112 = arith.constant 1.000000e+00 : f32
    %342 = vector.broadcast %cst_112 : f32 to vector<2x128xf32>
    %343 = arith.addf %342, %341 : vector<2x128xf32>
    %344 = arith.divf %342, %343 : vector<2x128xf32>
    %345 = vector.extract_strided_slice %344 {offsets = [0, 0], sizes = [2, 32], strides = [1, 1]} : vector<2x128xf32> to vector<2x32xf32>
    %346 = vector.extract_strided_slice %344 {offsets = [0, 32], sizes = [2, 32], strides = [1, 1]} : vector<2x128xf32> to vector<2x32xf32>
    %347 = vector.extract_strided_slice %344 {offsets = [0, 96], sizes = [2, 32], strides = [1, 1]} : vector<2x128xf32> to vector<2x32xf32>
    %348 = vector.extract_strided_slice %339 {offsets = [0, 64], sizes = [2, 32], strides = [1, 1]} : vector<2x128xf32> to vector<2x32xf32>
    %349 = math.tanh %348 : vector<2x32xf32>
    %350 = arith.mulf %346, %333 : vector<2x32xf32>
    %351 = arith.mulf %345, %349 : vector<2x32xf32>
    %352 = arith.addf %350, %351 : vector<2x32xf32>
    %353 = math.tanh %352 : vector<2x32xf32>
    %354 = arith.mulf %347, %353 : vector<2x32xf32>
    %355 = vector.extract_strided_slice %294 {offsets = [6, 0], sizes = [2, 128], strides = [1, 1]} : vector<16x128xf32> to vector<2x128xf32>
    %356 = arith.truncf %354 : vector<2x32xf32> to vector<2x32xbf16>
    %cst_113 = arith.constant dense<0.000000e+00> : vector<2x128xf32>
    %357 = tpu.matmul %356, %295, %cst_113 {dimension_numbers = #tpu.dot_dimension_numbers<[1], [0], [0], [1], [0, 0, 1, 1], [], []>} : vector<2x32xbf16>, vector<32x128xbf16>, vector<2x128xf32> -> vector<2x128xf32>
    %358 = arith.addf %355, %357 : vector<2x128xf32>
    %359 = arith.negf %358 : vector<2x128xf32>
    %360 = math.exp %359 : vector<2x128xf32>
    %cst_114 = arith.constant 1.000000e+00 : f32
    %361 = vector.broadcast %cst_114 : f32 to vector<2x128xf32>
    %362 = arith.addf %361, %360 : vector<2x128xf32>
    %363 = arith.divf %361, %362 : vector<2x128xf32>
    %364 = vector.extract_strided_slice %363 {offsets = [0, 0], sizes = [2, 32], strides = [1, 1]} : vector<2x128xf32> to vector<2x32xf32>
    %365 = vector.extract_strided_slice %363 {offsets = [0, 32], sizes = [2, 32], strides = [1, 1]} : vector<2x128xf32> to vector<2x32xf32>
    %366 = vector.extract_strided_slice %363 {offsets = [0, 96], sizes = [2, 32], strides = [1, 1]} : vector<2x128xf32> to vector<2x32xf32>
    %367 = vector.extract_strided_slice %358 {offsets = [0, 64], sizes = [2, 32], strides = [1, 1]} : vector<2x128xf32> to vector<2x32xf32>
    %368 = math.tanh %367 : vector<2x32xf32>
    %369 = arith.mulf %365, %352 : vector<2x32xf32>
    %370 = arith.mulf %364, %368 : vector<2x32xf32>
    %371 = arith.addf %369, %370 : vector<2x32xf32>
    %372 = math.tanh %371 : vector<2x32xf32>
    %373 = arith.mulf %366, %372 : vector<2x32xf32>
    %374 = vector.extract_strided_slice %294 {offsets = [8, 0], sizes = [2, 128], strides = [1, 1]} : vector<16x128xf32> to vector<2x128xf32>
    %375 = arith.truncf %373 : vector<2x32xf32> to vector<2x32xbf16>
    %cst_115 = arith.constant dense<0.000000e+00> : vector<2x128xf32>
    %376 = tpu.matmul %375, %295, %cst_115 {dimension_numbers = #tpu.dot_dimension_numbers<[1], [0], [0], [1], [0, 0, 1, 1], [], []>} : vector<2x32xbf16>, vector<32x128xbf16>, vector<2x128xf32> -> vector<2x128xf32>
    %377 = arith.addf %374, %376 : vector<2x128xf32>
    %378 = arith.negf %377 : vector<2x128xf32>
    %379 = math.exp %378 : vector<2x128xf32>
    %cst_116 = arith.constant 1.000000e+00 : f32
    %380 = vector.broadcast %cst_116 : f32 to vector<2x128xf32>
    %381 = arith.addf %380, %379 : vector<2x128xf32>
    %382 = arith.divf %380, %381 : vector<2x128xf32>
    %383 = vector.extract_strided_slice %382 {offsets = [0, 0], sizes = [2, 32], strides = [1, 1]} : vector<2x128xf32> to vector<2x32xf32>
    %384 = vector.extract_strided_slice %382 {offsets = [0, 32], sizes = [2, 32], strides = [1, 1]} : vector<2x128xf32> to vector<2x32xf32>
    %385 = vector.extract_strided_slice %382 {offsets = [0, 96], sizes = [2, 32], strides = [1, 1]} : vector<2x128xf32> to vector<2x32xf32>
    %386 = vector.extract_strided_slice %377 {offsets = [0, 64], sizes = [2, 32], strides = [1, 1]} : vector<2x128xf32> to vector<2x32xf32>
    %387 = math.tanh %386 : vector<2x32xf32>
    %388 = arith.mulf %384, %371 : vector<2x32xf32>
    %389 = arith.mulf %383, %387 : vector<2x32xf32>
    %390 = arith.addf %388, %389 : vector<2x32xf32>
    %391 = math.tanh %390 : vector<2x32xf32>
    %392 = arith.mulf %385, %391 : vector<2x32xf32>
    %393 = vector.extract_strided_slice %294 {offsets = [10, 0], sizes = [2, 128], strides = [1, 1]} : vector<16x128xf32> to vector<2x128xf32>
    %394 = arith.truncf %392 : vector<2x32xf32> to vector<2x32xbf16>
    %cst_117 = arith.constant dense<0.000000e+00> : vector<2x128xf32>
    %395 = tpu.matmul %394, %295, %cst_117 {dimension_numbers = #tpu.dot_dimension_numbers<[1], [0], [0], [1], [0, 0, 1, 1], [], []>} : vector<2x32xbf16>, vector<32x128xbf16>, vector<2x128xf32> -> vector<2x128xf32>
    %396 = arith.addf %393, %395 : vector<2x128xf32>
    %397 = arith.negf %396 : vector<2x128xf32>
    %398 = math.exp %397 : vector<2x128xf32>
    %cst_118 = arith.constant 1.000000e+00 : f32
    %399 = vector.broadcast %cst_118 : f32 to vector<2x128xf32>
    %400 = arith.addf %399, %398 : vector<2x128xf32>
    %401 = arith.divf %399, %400 : vector<2x128xf32>
    %402 = vector.extract_strided_slice %401 {offsets = [0, 0], sizes = [2, 32], strides = [1, 1]} : vector<2x128xf32> to vector<2x32xf32>
    %403 = vector.extract_strided_slice %401 {offsets = [0, 32], sizes = [2, 32], strides = [1, 1]} : vector<2x128xf32> to vector<2x32xf32>
    %404 = vector.extract_strided_slice %401 {offsets = [0, 96], sizes = [2, 32], strides = [1, 1]} : vector<2x128xf32> to vector<2x32xf32>
    %405 = vector.extract_strided_slice %396 {offsets = [0, 64], sizes = [2, 32], strides = [1, 1]} : vector<2x128xf32> to vector<2x32xf32>
    %406 = math.tanh %405 : vector<2x32xf32>
    %407 = arith.mulf %403, %390 : vector<2x32xf32>
    %408 = arith.mulf %402, %406 : vector<2x32xf32>
    %409 = arith.addf %407, %408 : vector<2x32xf32>
    %410 = math.tanh %409 : vector<2x32xf32>
    %411 = arith.mulf %404, %410 : vector<2x32xf32>
    %412 = vector.extract_strided_slice %294 {offsets = [12, 0], sizes = [2, 128], strides = [1, 1]} : vector<16x128xf32> to vector<2x128xf32>
    %413 = arith.truncf %411 : vector<2x32xf32> to vector<2x32xbf16>
    %cst_119 = arith.constant dense<0.000000e+00> : vector<2x128xf32>
    %414 = tpu.matmul %413, %295, %cst_119 {dimension_numbers = #tpu.dot_dimension_numbers<[1], [0], [0], [1], [0, 0, 1, 1], [], []>} : vector<2x32xbf16>, vector<32x128xbf16>, vector<2x128xf32> -> vector<2x128xf32>
    %415 = arith.addf %412, %414 : vector<2x128xf32>
    %416 = arith.negf %415 : vector<2x128xf32>
    %417 = math.exp %416 : vector<2x128xf32>
    %cst_120 = arith.constant 1.000000e+00 : f32
    %418 = vector.broadcast %cst_120 : f32 to vector<2x128xf32>
    %419 = arith.addf %418, %417 : vector<2x128xf32>
    %420 = arith.divf %418, %419 : vector<2x128xf32>
    %421 = vector.extract_strided_slice %420 {offsets = [0, 0], sizes = [2, 32], strides = [1, 1]} : vector<2x128xf32> to vector<2x32xf32>
    %422 = vector.extract_strided_slice %420 {offsets = [0, 32], sizes = [2, 32], strides = [1, 1]} : vector<2x128xf32> to vector<2x32xf32>
    %423 = vector.extract_strided_slice %420 {offsets = [0, 96], sizes = [2, 32], strides = [1, 1]} : vector<2x128xf32> to vector<2x32xf32>
    %424 = vector.extract_strided_slice %415 {offsets = [0, 64], sizes = [2, 32], strides = [1, 1]} : vector<2x128xf32> to vector<2x32xf32>
    %425 = math.tanh %424 : vector<2x32xf32>
    %426 = arith.mulf %422, %409 : vector<2x32xf32>
    %427 = arith.mulf %421, %425 : vector<2x32xf32>
    %428 = arith.addf %426, %427 : vector<2x32xf32>
    %429 = math.tanh %428 : vector<2x32xf32>
    %430 = arith.mulf %423, %429 : vector<2x32xf32>
    %431 = vector.extract_strided_slice %294 {offsets = [14, 0], sizes = [2, 128], strides = [1, 1]} : vector<16x128xf32> to vector<2x128xf32>
    %432 = arith.truncf %430 : vector<2x32xf32> to vector<2x32xbf16>
    %cst_121 = arith.constant dense<0.000000e+00> : vector<2x128xf32>
    %433 = tpu.matmul %432, %295, %cst_121 {dimension_numbers = #tpu.dot_dimension_numbers<[1], [0], [0], [1], [0, 0, 1, 1], [], []>} : vector<2x32xbf16>, vector<32x128xbf16>, vector<2x128xf32> -> vector<2x128xf32>
    %434 = arith.addf %431, %433 : vector<2x128xf32>
    %435 = arith.negf %434 : vector<2x128xf32>
    %436 = math.exp %435 : vector<2x128xf32>
    %cst_122 = arith.constant 1.000000e+00 : f32
    %437 = vector.broadcast %cst_122 : f32 to vector<2x128xf32>
    %438 = arith.addf %437, %436 : vector<2x128xf32>
    %439 = arith.divf %437, %438 : vector<2x128xf32>
    %440 = vector.extract_strided_slice %439 {offsets = [0, 0], sizes = [2, 32], strides = [1, 1]} : vector<2x128xf32> to vector<2x32xf32>
    %441 = vector.extract_strided_slice %439 {offsets = [0, 32], sizes = [2, 32], strides = [1, 1]} : vector<2x128xf32> to vector<2x32xf32>
    %442 = vector.extract_strided_slice %439 {offsets = [0, 96], sizes = [2, 32], strides = [1, 1]} : vector<2x128xf32> to vector<2x32xf32>
    %443 = vector.extract_strided_slice %434 {offsets = [0, 64], sizes = [2, 32], strides = [1, 1]} : vector<2x128xf32> to vector<2x32xf32>
    %444 = math.tanh %443 : vector<2x32xf32>
    %445 = arith.mulf %441, %428 : vector<2x32xf32>
    %446 = arith.mulf %440, %444 : vector<2x32xf32>
    %447 = arith.addf %445, %446 : vector<2x32xf32>
    %448 = math.tanh %447 : vector<2x32xf32>
    %449 = arith.mulf %442, %448 : vector<2x32xf32>
    %c1_123 = arith.constant 1 : index
    %c0_124 = arith.constant 0 : index
    %c0_125 = arith.constant 0 : index
    %450 = vector.load %arg8[%c1_123, %c0_124, %c0_125] : memref<2x2x32xf32, #tpu.memory_space<vmem>>, vector<1x2x32xf32>
    %451 = vector.shape_cast %450 : vector<1x2x32xf32> to vector<2x32xf32>
    %452 = vector.shape_cast %449 : vector<2x32xf32> to vector<1x2x32xf32>
    tpu.vector_store %arg8[%c1_123, %c0_124, %c0_125], %452 {strides = array<i32>} : memref<2x2x32xf32, #tpu.memory_space<vmem>>, vector<1x2x32xf32>,
    %c1_126 = arith.constant 1 : index
    %c0_127 = arith.constant 0 : index
    %c0_128 = arith.constant 0 : index
    %453 = vector.load %arg9[%c1_126, %c0_127, %c0_128] : memref<2x2x32xf32, #tpu.memory_space<vmem>>, vector<1x2x32xf32>
    %454 = vector.shape_cast %453 : vector<1x2x32xf32> to vector<2x32xf32>
    %455 = vector.shape_cast %447 : vector<2x32xf32> to vector<1x2x32xf32>
    tpu.vector_store %arg9[%c1_126, %c0_127, %c0_128], %455 {strides = array<i32>} : memref<2x2x32xf32, #tpu.memory_space<vmem>>, vector<1x2x32xf32>,
    return
  }
}

</mosaic_0001>

<llo_original>
// kernel: _encoder_forward.1
$region0: #{_encoder_forward.1}
  #allocation0 [shape = 'u32[]', space=smem, size = 0x4, offset = 0x4, fixed_abs, tag = 'smem constant byte address 0x4 - core index']
  #allocation1 [shape = 'u32[144,128]{1,0:T(1,128)}', space=vmem, size = 0x12000, scoped, tag = 'internal scratch']
  #allocation2 [shape = 'f32[16,32]{1,0:T(8,128)}', space=vmem, size = 0x2000, scoped, tag = 'scratch operand']
  #allocation3 [shape = 'f32[16,32]{1,0:T(8,128)}', space=vmem, size = 0x2000, scoped, tag = 'scratch operand']
  %s0 = inlined_call_operand.vmem [shape: s32[16], index: 0, kind: input, shape index: {}]
  %s1 = inlined_call_operand.vmem [shape: f32[500,32], index: 1, kind: input, shape index: {}]
  %s2 = inlined_call_operand.vmem [shape: bf16[32,128], index: 2, kind: input, shape index: {}]
  %s3 = inlined_call_operand.vmem [shape: bf16[32,128], index: 3, kind: input, shape index: {}]
  %s4 = inlined_call_operand.vmem [shape: f32[1,128], index: 4, kind: input, shape index: {}]
  %s5 = inlined_call_operand.vmem [shape: bf16[32,128], index: 5, kind: input, shape index: {}]
  %s6 = inlined_call_operand.vmem [shape: bf16[32,128], index: 6, kind: input, shape index: {}]
  %s7 = inlined_call_operand.vmem [shape: f32[1,128], index: 7, kind: input, shape index: {}]
  %s8 = inlined_call_operand.hbm [shape: f32[2,2,32], index: 8, kind: output, shape index: {0}]
  %s9 = inlined_call_operand.hbm [shape: f32[2,2,32], index: 9, kind: output, shape index: {1}]
  %10 = xla_tuple %s8, %s9
  %s11 = sld [smem:[#allocation0]]
  $region54: #{_encoder_forward.1} parent=0
    _
  %s13 = ssub.s32 1, %s11
  %s14 = scalar_select 0, %s13, %s11
  $region1: #{_encoder_forward.1} parent=0
    #allocation4 [shape = 'u8[512]{0}', space=smem, size = 0x200, scoped, tag = 'input window, operand 0, single buffered']
    #allocation5 [shape = 's32[1]{0}', space=sflag, size = 0x4, scoped, tag = 'scoped memory for _encoder_forward.1']
    #allocation6 [shape = 's32[1]{0}', space=sflag, size = 0x4, scoped, tag = 'scoped memory for _encoder_forward.1']
    #allocation7 [shape = 'u8[2048]{0}', space=vmem, size = 0x800, scoped, tag = 'output window, operand 0, single buffered']
    #allocation8 [shape = 'u8[2048]{0}', space=vmem, size = 0x800, scoped, tag = 'output window, operand 1, single buffered']
    #allocation9 [shape = 's32[1]{0}', space=sflag, size = 0x4, scoped, tag = 'scoped memory for _encoder_forward.1']
    %15 = vsyncpa [#allocation6], 0
    %16 = vsyncpa [#allocation5], 0
    %17 = vsyncpa [#allocation9], 0
    // Predicated region
    $region2: #{_encoder_forward.1} parent=1 // pred_check
      _
    $region3: #{_encoder_forward.1} parent=1 // pred_check_branch
      %19 = sbr.rel (0) target = $region5
    $region4: #{_encoder_forward.1} parent=1 // pred_region
      %s21 = ssub.s32 16, 16
      %22 = vsyncadd [#allocation6], %s21
      %s24 = sshll.u32 %s0, 4
      %s25 = int_to_ptr.vmem [resolvable:$true] %s24
      %27 = dma.vmem_to_smem %s25, 16, [#allocation4], [#allocation6]
    $region5: #{_encoder_forward.1} parent=1 // pred_fallthru
      _
    // Predicated region
    $region6: #{_encoder_forward.1} parent=1 // pred_check
      _
    $region7: #{_encoder_forward.1} parent=1 // pred_check_branch
      %29 = sbr.rel (0) target = $region9
    $region8: #{_encoder_forward.1} parent=1 // pred_region
      _
    $region9: #{_encoder_forward.1} parent=1 // pred_fallthru
      _
    // Predicated region
    $region10: #{_encoder_forward.1} parent=1 // pred_check
      _
    $region11: #{_encoder_forward.1} parent=1 // pred_check_branch
      %31 = sbr.rel (0) target = $region13
    $region12: #{_encoder_forward.1} parent=1 // pred_region
      _
    $region13: #{_encoder_forward.1} parent=1 // pred_fallthru
      _
    // Predicated region
    $region14: #{_encoder_forward.1} parent=1 // pred_check
      _
    $region15: #{_encoder_forward.1} parent=1 // pred_check_branch
      %33 = sbr.rel (0) target = $region17
    $region16: #{_encoder_forward.1} parent=1 // pred_region
      _
    $region17: #{_encoder_forward.1} parent=1 // pred_fallthru
      _
    // Predicated region
    $region18: #{_encoder_forward.1} parent=1 // pred_check
      _
    $region19: #{_encoder_forward.1} parent=1 // pred_check_branch
      %35 = sbr.rel (0) target = $region21
    $region20: #{_encoder_forward.1} parent=1 // pred_region
      _
    $region21: #{_encoder_forward.1} parent=1 // pred_fallthru
      _
    // Predicated region
    $region22: #{_encoder_forward.1} parent=1 // pred_check
      _
    $region23: #{_encoder_forward.1} parent=1 // pred_check_branch
      %37 = sbr.rel (0) target = $region25
    $region24: #{_encoder_forward.1} parent=1 // pred_region
      _
    $region25: #{_encoder_forward.1} parent=1 // pred_fallthru
      _
    // Predicated region
    $region26: #{_encoder_forward.1} parent=1 // pred_check
      _
    $region27: #{_encoder_forward.1} parent=1 // pred_check_branch
      %39 = sbr.rel (0) target = $region29
    $region28: #{_encoder_forward.1} parent=1 // pred_region
      _
    $region29: #{_encoder_forward.1} parent=1 // pred_fallthru
      _
    // Predicated region
    $region30: #{_encoder_forward.1} parent=1 // pred_check
      _
    $region31: #{_encoder_forward.1} parent=1 // pred_check_branch
      %41 = sbr.rel (0) target = $region33
    $region32: #{_encoder_forward.1} parent=1 // pred_region
      _
    $region33: #{_encoder_forward.1} parent=1 // pred_fallthru
      _
    // Predicated region
    $region34: #{_encoder_forward.1} parent=1 // pred_check
      _
    $region35: #{_encoder_forward.1} parent=1 // pred_check_branch
      %43 = sbr.rel (0) target = $region37
    $region36: #{_encoder_forward.1} parent=1 // pred_region
      %44 = dma.done [#allocation6], 16
    $region37: #{_encoder_forward.1} parent=1 // pred_fallthru
      _
    %45 = sfence
    %s47 = sld [smem:[#allocation4]]
    %s48 = scalar_lea.vmem %s1, %s47
    %v49 = vld [vmem:[%s48] sm:$0x1]
    %vm50 = vcmask 253952
    %51 = vst.msk [vmem:[#allocation2] sm:$0x1] %vm50, %v49
    %s52 = sld [smem:[#allocation4 + $0x1]]
    %s53 = scalar_lea.vmem %s1, %s52
    %v54 = vld [vmem:[%s53] sm:$0x1]
    %55 = vst.msk [vmem:[#allocation2 + $0x1] sm:$0x1] %vm50, %v54
    %s56 = sld [smem:[#allocation4 + $0x2]]
    %s57 = scalar_lea.vmem %s1, %s56
    %v58 = vld [vmem:[%s57] sm:$0x1]
    %59 = vst.msk [vmem:[#allocation2 + $0x2] sm:$0x1] %vm50, %v58
    %s60 = sld [smem:[#allocation4 + $0x3]]
    %s61 = scalar_lea.vmem %s1, %s60
    %v62 = vld [vmem:[%s61] sm:$0x1]
    %63 = vst.msk [vmem:[#allocation2 + $0x3] sm:$0x1] %vm50, %v62
    %s64 = sld [smem:[#allocation4 + $0x4]]
    %s65 = scalar_lea.vmem %s1, %s64
    %v66 = vld [vmem:[%s65] sm:$0x1]
    %67 = vst.msk [vmem:[#allocation2 + $0x4] sm:$0x1] %vm50, %v66
    %s68 = sld [smem:[#allocation4 + $0x5]]
    %s69 = scalar_lea.vmem %s1, %s68
    %v70 = vld [vmem:[%s69] sm:$0x1]
    %71 = vst.msk [vmem:[#allocation2 + $0x5] sm:$0x1] %vm50, %v70
    %s72 = sld [smem:[#allocation4 + $0x6]]
    %s73 = scalar_lea.vmem %s1, %s72
    %v74 = vld [vmem:[%s73] sm:$0x1]
    %75 = vst.msk [vmem:[#allocation2 + $0x6] sm:$0x1] %vm50, %v74
    %s76 = sld [smem:[#allocation4 + $0x7]]
    %s77 = scalar_lea.vmem %s1, %s76
    %v78 = vld [vmem:[%s77] sm:$0x1]
    %79 = vst.msk [vmem:[#allocation2 + $0x7] sm:$0x1] %vm50, %v78
    %s80 = sld [smem:[#allocation4 + $0x8]]
    %s81 = scalar_lea.vmem %s1, %s80
    %v82 = vld [vmem:[%s81] sm:$0x1]
    %83 = vst.msk [vmem:[#allocation2 + $0x8] sm:$0x1] %vm50, %v82
    %s84 = sld [smem:[#allocation4 + $0x9]]
    %s85 = scalar_lea.vmem %s1, %s84
    %v86 = vld [vmem:[%s85] sm:$0x1]
    %87 = vst.msk [vmem:[#allocation2 + $0x9] sm:$0x1] %vm50, %v86
    %s88 = sld [smem:[#allocation4 + $0xa]]
    %s89 = scalar_lea.vmem %s1, %s88
    %v90 = vld [vmem:[%s89] sm:$0x1]
    %91 = vst.msk [vmem:[#allocation2 + $0xa] sm:$0x1] %vm50, %v90
    %s92 = sld [smem:[#allocation4 + $0xb]]
    %s93 = scalar_lea.vmem %s1, %s92
    %v94 = vld [vmem:[%s93] sm:$0x1]
    %95 = vst.msk [vmem:[#allocation2 + $0xb] sm:$0x1] %vm50, %v94
    %s96 = sld [smem:[#allocation4 + $0xc]]
    %s97 = scalar_lea.vmem %s1, %s96
    %v98 = vld [vmem:[%s97] sm:$0x1]
    %99 = vst.msk [vmem:[#allocation2 + $0xc] sm:$0x1] %vm50, %v98
    %s100 = sld [smem:[#allocation4 + $0xd]]
    %s101 = scalar_lea.vmem %s1, %s100
    %v102 = vld [vmem:[%s101] sm:$0x1]
    %103 = vst.msk [vmem:[#allocation2 + $0xd] sm:$0x1] %vm50, %v102
    %s104 = sld [smem:[#allocation4 + $0xe]]
    %s105 = scalar_lea.vmem %s1, %s104
    %v106 = vld [vmem:[%s105] sm:$0x1]
    %107 = vst.msk [vmem:[#allocation2 + $0xe] sm:$0x1] %vm50, %v106
    %s108 = sld [smem:[#allocation4 + $0xf]]
    %s109 = scalar_lea.vmem %s1, %s108
    %v110 = vld [vmem:[%s109] sm:$0x1]
    %111 = vst.msk [vmem:[#allocation2 + $0xf] sm:$0x1] %vm50, %v110
    %v112 = vld [vmem:[#allocation2] sm:$0xff]
    %v113 = vld [vmem:[#allocation2 + $0x8] sm:$0xff]
    %v114 = vpack.c.bf16 %v113, %v112
    %v115 = vld [vmem:[%s2] sm:$0xf]
    %v116 = vld [vmem:[%s2 + $0x4] sm:$0xf]
    %v117 = vld [vmem:[%s2 + $0x8] sm:$0xf]
    %v118 = vld [vmem:[%s2 + $0xc] sm:$0xf]
    %v119 = vld [vmem:[%s4] sm:$0x1]
    %v121 = vlaneseq
    %v122 = vshrl.u32 %v121, 7
    %v123 = vsub.s32 0, %v122
    %v124 = vrot.slane %v119, %v123
    %v130 = vunpack.c.l.b16 %v115
    %v131 = vunpack.c.l.b16 %v116
    %v132 = vunpack.c.l.b16 %v117
    %v133 = vunpack.c.l.b16 %v118
    %v134 = vpack.c.b16 %v131, %v130
    %v135 = vpack.c.b16 %v133, %v132
    %vm138 = vcmask 261120
    %v140 = vsel %vm138, %v114, 0
    %142 = vmatprep.subr.bf16.mxu0 0
    %143 = vmatpush1.bf16.msra.mxu0 %v134
    %144 = vmatprep.subr.bf16.mxu0 0
    %145 = vmatpush1.bf16.msra.mxu0 %v135
    %146 = vmatprep.subr.bf16.mxu0 0
    %147 = vmatpush1.bf16.msra.mxu0 0
    %148 = vmatprep.subr.bf16.mxu0 0
    %149 = vmatpush1.bf16.msra.mxu0 0
    %150 = vmatprep.subr.bf16.mxu0 0
    %151 = vmatpush1.bf16.msra.mxu0 0
    %152 = vmatprep.subr.bf16.mxu0 0
    %153 = vmatpush1.bf16.msra.mxu0 0
    %154 = vmatprep.subr.bf16.mxu0 0
    %155 = vmatpush1.bf16.msra.mxu0 0
    %156 = vmatprep.subr.bf16.mxu0 0
    %157 = vmatpush1.bf16.msra.mxu0 0
    %158 = vmatprep.subr.bf16.mxu0 0
    %159 = vmatpush1.bf16.msra.mxu0 0
    %160 = vmatprep.subr.bf16.mxu0 0
    %161 = vmatpush1.bf16.msra.mxu0 0
    %162 = vmatprep.subr.bf16.mxu0 0
    %163 = vmatpush1.bf16.msra.mxu0 0
    %164 = vmatprep.subr.bf16.mxu0 0
    %165 = vmatpush1.bf16.msra.mxu0 0
    %166 = vmatprep.subr.bf16.mxu0 0
    %167 = vmatpush1.bf16.msra.mxu0 0
    %168 = vmatprep.subr.bf16.mxu0 0
    %169 = vmatpush1.bf16.msra.mxu0 0
    %170 = vmatprep.subr.bf16.mxu0 0
    %171 = vmatpush1.bf16.msra.mxu0 0
    %172 = vmatprep.subr.bf16.mxu0 0
    %173 = vmatpush1.bf16.msra.mxu0 0
    %174 = vmatprep.mubr.bf16.mxu0 0
    %175 = vmatmul.mubr.bf16.gmra.mrb[0].mxu0 %v140
    %v176 = vpop.f32.mrb[0].mxu0
    %v177 = vadd.f32 %v124, %v176
    %v178 = vpop.f32.mrb[0].mxu0
    %v179 = vpop.f32.mrb[0].mxu0
    %v180 = vadd.f32 %v124, %v179
    %v181 = vpop.f32.mrb[0].mxu0
    %182 = vdwg.mxu0
    %v183 = vld [vmem:[%s3] sm:$0xf]
    %v184 = vld [vmem:[%s3 + $0x4] sm:$0xf]
    %v185 = vld [vmem:[%s3 + $0x8] sm:$0xf]
    %v186 = vld [vmem:[%s3 + $0xc] sm:$0xf]
    %v191 = vunpack.c.l.b16 %v183
    %v192 = vunpack.c.l.b16 %v184
    %v193 = vunpack.c.l.b16 %v185
    %v194 = vunpack.c.l.b16 %v186
    %v195 = vpack.c.b16 %v192, %v191
    %v196 = vpack.c.b16 %v194, %v193
    %v200 = vsel %vm138, 0, 0
    %202 = vmatprep.subr.bf16.mxu0 0
    %203 = vmatpush1.bf16.msra.mxu0 %v195
    %204 = vmatprep.subr.bf16.mxu0 0
    %205 = vmatpush1.bf16.msra.mxu0 %v196
    %206 = vmatprep.subr.bf16.mxu0 0
    %207 = vmatpush1.bf16.msra.mxu0 0
    %208 = vmatprep.subr.bf16.mxu0 0
    %209 = vmatpush1.bf16.msra.mxu0 0
    %210 = vmatprep.subr.bf16.mxu0 0
    %211 = vmatpush1.bf16.msra.mxu0 0
    %212 = vmatprep.subr.bf16.mxu0 0
    %213 = vmatpush1.bf16.msra.mxu0 0
    %214 = vmatprep.subr.bf16.mxu0 0
    %215 = vmatpush1.bf16.msra.mxu0 0
    %216 = vmatprep.subr.bf16.mxu0 0
    %217 = vmatpush1.bf16.msra.mxu0 0
    %218 = vmatprep.subr.bf16.mxu0 0
    %219 = vmatpush1.bf16.msra.mxu0 0
    %220 = vmatprep.subr.bf16.mxu0 0
    %221 = vmatpush1.bf16.msra.mxu0 0
    %222 = vmatprep.subr.bf16.mxu0 0
    %223 = vmatpush1.bf16.msra.mxu0 0
    %224 = vmatprep.subr.bf16.mxu0 0
    %225 = vmatpush1.bf16.msra.mxu0 0
    %226 = vmatprep.subr.bf16.mxu0 0
    %227 = vmatpush1.bf16.msra.mxu0 0
    %228 = vmatprep.subr.bf16.mxu0 0
    %229 = vmatpush1.bf16.msra.mxu0 0
    %230 = vmatprep.subr.bf16.mxu0 0
    %231 = vmatpush1.bf16.msra.mxu0 0
    %232 = vmatprep.subr.bf16.mxu0 0
    %233 = vmatpush1.bf16.msra.mxu0 0
    %234 = vmatprep.mubr.bf16.mxu0 0
    %235 = vmatmul.mubr.bf16.gmra.mrb[0].mxu0 %v200
    %v236 = vpop.f32.mrb[0].mxu0
    %v237 = vadd.f32 0.0, %v236
    %v238 = vpop.f32.mrb[0].mxu0
    %v239 = vpop.f32.mrb[0].mxu0
    %v240 = vpop.f32.mrb[0].mxu0
    %241 = vdwg.mxu0
    %v242 = vadd.f32 %v177, %v237
    %v243 = vxor.u32 %v242, 2147483648
    %v244 = vmul.f32 %v243, 1.442695
    %v245 = vpow.pop %v244
    %v246 = vadd.f32 %v245, 1.0
    %v247 = vrcp.pop %v246
    %v248 = vmul.f32 1.0, %v247
    %v249 = vtanh.pop %v242
    %v250 = vmul.f32 %v248, 0.0
    %252 = vrot.lane.b32.xlu0 %v249, 64
    %v253 = vpop.permute.xlu0 %252
    %v255 = vmul.f32 %v248, %v253
    %257 = vrot.lane.b32.xlu0 %v255, 32
    %v258 = vpop.permute.xlu0 %257
    %v260 = vadd.f32 %v250, %v258
    %v261 = vtanh.pop %v260
    %263 = vrot.lane.b32.xlu0 %v261, 64
    %v264 = vpop.permute.xlu0 %263
    %v266 = vmul.f32 %v248, %v264
    %268 = vrot.lane.b32.xlu0 %v266, 32
    %v269 = vpop.permute.xlu0 %268
    %vm271 = vcmask 254976
    %272 = vst.msk [vmem:[#allocation3] sm:$0x3] %vm271, %v269
    %v273 = vpack.c.bf16 %v266, %v266
    %275 = vrot.lane.b32.xlu0 %v273, 32
    %v276 = vpop.permute.xlu0 %275
    %v278 = vsel %vm138, %v276, 0
    %280 = vmatprep.subr.bf16.mxu0 0
    %281 = vmatpush1.bf16.msra.mxu0 %v195
    %282 = vmatprep.subr.bf16.mxu0 0
    %283 = vmatpush1.bf16.msra.mxu0 %v196
    %284 = vmatprep.subr.bf16.mxu0 0
    %285 = vmatpush1.bf16.msra.mxu0 0
    %286 = vmatprep.subr.bf16.mxu0 0
    %287 = vmatpush1.bf16.msra.mxu0 0
    %288 = vmatprep.subr.bf16.mxu0 0
    %289 = vmatpush1.bf16.msra.mxu0 0
    %290 = vmatprep.subr.bf16.mxu0 0
    %291 = vmatpush1.bf16.msra.mxu0 0
    %292 = vmatprep.subr.bf16.mxu0 0
    %293 = vmatpush1.bf16.msra.mxu0 0
    %294 = vmatprep.subr.bf16.mxu0 0
    %295 = vmatpush1.bf16.msra.mxu0 0
    %296 = vmatprep.subr.bf16.mxu0 0
    %297 = vmatpush1.bf16.msra.mxu0 0
    %298 = vmatprep.subr.bf16.mxu0 0
    %299 = vmatpush1.bf16.msra.mxu0 0
    %300 = vmatprep.subr.bf16.mxu0 0
    %301 = vmatpush1.bf16.msra.mxu0 0
    %302 = vmatprep.subr.bf16.mxu0 0
    %303 = vmatpush1.bf16.msra.mxu0 0
    %304 = vmatprep.subr.bf16.mxu0 0
    %305 = vmatpush1.bf16.msra.mxu0 0
    %306 = vmatprep.subr.bf16.mxu0 0
    %307 = vmatpush1.bf16.msra.mxu0 0
    %308 = vmatprep.subr.bf16.mxu0 0
    %309 = vmatpush1.bf16.msra.mxu0 0
    %310 = vmatprep.subr.bf16.mxu0 0
    %311 = vmatpush1.bf16.msra.mxu0 0
    %312 = vmatprep.mubr.bf16.mxu0 0
    %313 = vmatmul.mubr.bf16.gmra.mrb[0].mxu0 %v278
    %v314 = vpop.f32.mrb[0].mxu0
    %v315 = vadd.f32 0.0, %v314
    %v316 = vpop.f32.mrb[0].mxu0
    %v317 = vpop.f32.mrb[0].mxu0
    %v318 = vpop.f32.mrb[0].mxu0
    %319 = vdwg.mxu0
    %v321 = vrot.slane %v315, 6
    %v323 = vadd.f32 %v177, %v321
    %v324 = vxor.u32 %v323, 2147483648
    %v325 = vmul.f32 %v324, 1.442695
    %v326 = vpow.pop %v325
    %v327 = vadd.f32 %v326, 1.0
    %v328 = vrcp.pop %v327
    %v329 = vmul.f32 1.0, %v328
    %v330 = vtanh.pop %v323
    %v332 = vrot.slane %v260, 6
    %v334 = vmul.f32 %v329, %v332
    %336 = vrot.lane.b32.xlu0 %v330, 64
    %v337 = vpop.permute.xlu0 %336
    %v339 = vmul.f32 %v329, %v337
    %341 = vrot.lane.b32.xlu0 %v339, 32
    %v342 = vpop.permute.xlu0 %341
    %v344 = vadd.f32 %v334, %v342
    %v345 = vtanh.pop %v344
    %347 = vrot.lane.b32.xlu0 %v345, 64
    %v348 = vpop.permute.xlu0 %347
    %v350 = vmul.f32 %v329, %v348
    %352 = vrot.lane.b32.xlu0 %v350, 32
    %v353 = vpop.permute.xlu0 %352
    %vm355 = vcmask 257026
    %356 = vst.msk [vmem:[#allocation3] sm:$0xc] %vm355, %v353
    %v357 = vpack.c.bf16 %v350, %v350
    %v359 = vrot.slane %v357, 1
    %360 = vrot.lane.b32.xlu0 %v359, 32
    %v361 = vpop.permute.xlu0 %360
    %v363 = vsel %vm138, %v361, 0
    %365 = vmatprep.subr.bf16.mxu0 0
    %366 = vmatpush1.bf16.msra.mxu0 %v195
    %367 = vmatprep.subr.bf16.mxu0 0
    %368 = vmatpush1.bf16.msra.mxu0 %v196
    %369 = vmatprep.subr.bf16.mxu0 0
    %370 = vmatpush1.bf16.msra.mxu0 0
    %371 = vmatprep.subr.bf16.mxu0 0
    %372 = vmatpush1.bf16.msra.mxu0 0
    %373 = vmatprep.subr.bf16.mxu0 0
    %374 = vmatpush1.bf16.msra.mxu0 0
    %375 = vmatprep.subr.bf16.mxu0 0
    %376 = vmatpush1.bf16.msra.mxu0 0
    %377 = vmatprep.subr.bf16.mxu0 0
    %378 = vmatpush1.bf16.msra.mxu0 0
    %379 = vmatprep.subr.bf16.mxu0 0
    %380 = vmatpush1.bf16.msra.mxu0 0
    %381 = vmatprep.subr.bf16.mxu0 0
    %382 = vmatpush1.bf16.msra.mxu0 0
    %383 = vmatprep.subr.bf16.mxu0 0
    %384 = vmatpush1.bf16.msra.mxu0 0
    %385 = vmatprep.subr.bf16.mxu0 0
    %386 = vmatpush1.bf16.msra.mxu0 0
    %387 = vmatprep.subr.bf16.mxu0 0
    %388 = vmatpush1.bf16.msra.mxu0 0
    %389 = vmatprep.subr.bf16.mxu0 0
    %390 = vmatpush1.bf16.msra.mxu0 0
    %391 = vmatprep.subr.bf16.mxu0 0
    %392 = vmatpush1.bf16.msra.mxu0 0
    %393 = vmatprep.subr.bf16.mxu0 0
    %394 = vmatpush1.bf16.msra.mxu0 0
    %395 = vmatprep.subr.bf16.mxu0 0
    %396 = vmatpush1.bf16.msra.mxu0 0
    %397 = vmatprep.mubr.bf16.mxu0 0
    %398 = vmatmul.mubr.bf16.gmra.mrb[0].mxu0 %v363
    %v399 = vpop.f32.mrb[0].mxu0
    %v400 = vadd.f32 0.0, %v399
    %v401 = vpop.f32.mrb[0].mxu0
    %v402 = vpop.f32.mrb[0].mxu0
    %v403 = vpop.f32.mrb[0].mxu0
    %404 = vdwg.mxu0
    %v406 = vrot.slane %v400, 4
    %v408 = vadd.f32 %v177, %v406
    %v409 = vxor.u32 %v408, 2147483648
    %v410 = vmul.f32 %v409, 1.442695
    %v411 = vpow.pop %v410
    %v412 = vadd.f32 %v411, 1.0
    %v413 = vrcp.pop %v412
    %v414 = vmul.f32 1.0, %v413
    %v415 = vtanh.pop %v408
    %v417 = vrot.slane %v344, 6
    %v419 = vmul.f32 %v414, %v417
    %421 = vrot.lane.b32.xlu0 %v415, 64
    %v422 = vpop.permute.xlu0 %421
    %v424 = vmul.f32 %v414, %v422
    %426 = vrot.lane.b32.xlu0 %v424, 32
    %v427 = vpop.permute.xlu0 %426
    %v429 = vadd.f32 %v419, %v427
    %v430 = vtanh.pop %v429
    %432 = vrot.lane.b32.xlu0 %v430, 64
    %v433 = vpop.permute.xlu0 %432
    %v435 = vmul.f32 %v414, %v433
    %437 = vrot.lane.b32.xlu0 %v435, 32
    %v438 = vpop.permute.xlu0 %437
    %vm440 = vcmask 259076
    %441 = vst.msk [vmem:[#allocation3] sm:$0x30] %vm440, %v438
    %v442 = vpack.c.bf16 %v435, %v435
    %v444 = vrot.slane %v442, 2
    %445 = vrot.lane.b32.xlu0 %v444, 32
    %v446 = vpop.permute.xlu0 %445
    %v448 = vsel %vm138, %v446, 0
    %450 = vmatprep.subr.bf16.mxu0 0
    %451 = vmatpush1.bf16.msra.mxu0 %v195
    %452 = vmatprep.subr.bf16.mxu0 0
    %453 = vmatpush1.bf16.msra.mxu0 %v196
    %454 = vmatprep.subr.bf16.mxu0 0
    %455 = vmatpush1.bf16.msra.mxu0 0
    %456 = vmatprep.subr.bf16.mxu0 0
    %457 = vmatpush1.bf16.msra.mxu0 0
    %458 = vmatprep.subr.bf16.mxu0 0
    %459 = vmatpush1.bf16.msra.mxu0 0
    %460 = vmatprep.subr.bf16.mxu0 0
    %461 = vmatpush1.bf16.msra.mxu0 0
    %462 = vmatprep.subr.bf16.mxu0 0
    %463 = vmatpush1.bf16.msra.mxu0 0
    %464 = vmatprep.subr.bf16.mxu0 0
    %465 = vmatpush1.bf16.msra.mxu0 0
    %466 = vmatprep.subr.bf16.mxu0 0
    %467 = vmatpush1.bf16.msra.mxu0 0
    %468 = vmatprep.subr.bf16.mxu0 0
    %469 = vmatpush1.bf16.msra.mxu0 0
    %470 = vmatprep.subr.bf16.mxu0 0
    %471 = vmatpush1.bf16.msra.mxu0 0
    %472 = vmatprep.subr.bf16.mxu0 0
    %473 = vmatpush1.bf16.msra.mxu0 0
    %474 = vmatprep.subr.bf16.mxu0 0
    %475 = vmatpush1.bf16.msra.mxu0 0
    %476 = vmatprep.subr.bf16.mxu0 0
    %477 = vmatpush1.bf16.msra.mxu0 0
    %478 = vmatprep.subr.bf16.mxu0 0
    %479 = vmatpush1.bf16.msra.mxu0 0
    %480 = vmatprep.subr.bf16.mxu0 0
    %481 = vmatpush1.bf16.msra.mxu0 0
    %482 = vmatprep.mubr.bf16.mxu0 0
    %483 = vmatmul.mubr.bf16.gmra.mrb[0].mxu0 %v448
    %v484 = vpop.f32.mrb[0].mxu0
    %v485 = vadd.f32 0.0, %v484
    %v486 = vpop.f32.mrb[0].mxu0
    %v487 = vpop.f32.mrb[0].mxu0
    %v488 = vpop.f32.mrb[0].mxu0
    %489 = vdwg.mxu0
    %v491 = vrot.slane %v485, 2
    %v493 = vadd.f32 %v177, %v491
    %v494 = vxor.u32 %v493, 2147483648
    %v495 = vmul.f32 %v494, 1.442695
    %v496 = vpow.pop %v495
    %v497 = vadd.f32 %v496, 1.0
    %v498 = vrcp.pop %v497
    %v499 = vmul.f32 1.0, %v498
    %v500 = vtanh.pop %v493
    %v502 = vrot.slane %v429, 6
    %v504 = vmul.f32 %v499, %v502
    %506 = vrot.lane.b32.xlu0 %v500, 64
    %v507 = vpop.permute.xlu0 %506
    %v509 = vmul.f32 %v499, %v507
    %511 = vrot.lane.b32.xlu0 %v509, 32
    %v512 = vpop.permute.xlu0 %511
    %v514 = vadd.f32 %v504, %v512
    %v515 = vtanh.pop %v514
    %517 = vrot.lane.b32.xlu0 %v515, 64
    %v518 = vpop.permute.xlu0 %517
    %v520 = vmul.f32 %v499, %v518
    %522 = vrot.lane.b32.xlu0 %v520, 32
    %v523 = vpop.permute.xlu0 %522
    %vm525 = vcmask 261126
    %526 = vst.msk [vmem:[#allocation3] sm:$0xc0] %vm525, %v523
    %v527 = vpack.c.bf16 %v520, %v520
    %v529 = vrot.slane %v527, 3
    %530 = vrot.lane.b32.xlu0 %v529, 32
    %v531 = vpop.permute.xlu0 %530
    %v533 = vsel %vm138, %v531, 0
    %535 = vmatprep.subr.bf16.mxu0 0
    %536 = vmatpush1.bf16.msra.mxu0 %v195
    %537 = vmatprep.subr.bf16.mxu0 0
    %538 = vmatpush1.bf16.msra.mxu0 %v196
    %539 = vmatprep.subr.bf16.mxu0 0
    %540 = vmatpush1.bf16.msra.mxu0 0
    %541 = vmatprep.subr.bf16.mxu0 0
    %542 = vmatpush1.bf16.msra.mxu0 0
    %543 = vmatprep.subr.bf16.mxu0 0
    %544 = vmatpush1.bf16.msra.mxu0 0
    %545 = vmatprep.subr.bf16.mxu0 0
    %546 = vmatpush1.bf16.msra.mxu0 0
    %547 = vmatprep.subr.bf16.mxu0 0
    %548 = vmatpush1.bf16.msra.mxu0 0
    %549 = vmatprep.subr.bf16.mxu0 0
    %550 = vmatpush1.bf16.msra.mxu0 0
    %551 = vmatprep.subr.bf16.mxu0 0
    %552 = vmatpush1.bf16.msra.mxu0 0
    %553 = vmatprep.subr.bf16.mxu0 0
    %554 = vmatpush1.bf16.msra.mxu0 0
    %555 = vmatprep.subr.bf16.mxu0 0
    %556 = vmatpush1.bf16.msra.mxu0 0
    %557 = vmatprep.subr.bf16.mxu0 0
    %558 = vmatpush1.bf16.msra.mxu0 0
    %559 = vmatprep.subr.bf16.mxu0 0
    %560 = vmatpush1.bf16.msra.mxu0 0
    %561 = vmatprep.subr.bf16.mxu0 0
    %562 = vmatpush1.bf16.msra.mxu0 0
    %563 = vmatprep.subr.bf16.mxu0 0
    %564 = vmatpush1.bf16.msra.mxu0 0
    %565 = vmatprep.subr.bf16.mxu0 0
    %566 = vmatpush1.bf16.msra.mxu0 0
    %567 = vmatprep.mubr.bf16.mxu0 0
    %568 = vmatmul.mubr.bf16.gmra.mrb[0].mxu0 %v533
    %v569 = vpop.f32.mrb[0].mxu0
    %v570 = vadd.f32 0.0, %v569
    %v571 = vpop.f32.mrb[0].mxu0
    %v572 = vpop.f32.mrb[0].mxu0
    %v573 = vpop.f32.mrb[0].mxu0
    %574 = vdwg.mxu0
    %v575 = vadd.f32 %v180, %v570
    %v576 = vxor.u32 %v575, 2147483648
    %v577 = vmul.f32 %v576, 1.442695
    %v578 = vpow.pop %v577
    %v579 = vadd.f32 %v578, 1.0
    %v580 = vrcp.pop %v579
    %v581 = vmul.f32 1.0, %v580
    %v582 = vtanh.pop %v575
    %v584 = vrot.slane %v514, 6
    %v586 = vmul.f32 %v581, %v584
    %588 = vrot.lane.b32.xlu0 %v582, 64
    %v589 = vpop.permute.xlu0 %588
    %v591 = vmul.f32 %v581, %v589
    %593 = vrot.lane.b32.xlu0 %v591, 32
    %v594 = vpop.permute.xlu0 %593
    %v596 = vadd.f32 %v586, %v594
    %v597 = vtanh.pop %v596
    %599 = vrot.lane.b32.xlu0 %v597, 64
    %v600 = vpop.permute.xlu0 %599
    %v602 = vmul.f32 %v581, %v600
    %604 = vrot.lane.b32.xlu0 %v602, 32
    %v605 = vpop.permute.xlu0 %604
    %607 = vst.msk [vmem:[#allocation3 + $0x8] sm:$0x3] %vm271, %v605
    %v608 = vpack.c.bf16 %v602, %v602
    %610 = vrot.lane.b32.xlu0 %v608, 32
    %v611 = vpop.permute.xlu0 %610
    %v613 = vsel %vm138, %v611, 0
    %615 = vmatprep.subr.bf16.mxu0 0
    %616 = vmatpush1.bf16.msra.mxu0 %v195
    %617 = vmatprep.subr.bf16.mxu0 0
    %618 = vmatpush1.bf16.msra.mxu0 %v196
    %619 = vmatprep.subr.bf16.mxu0 0
    %620 = vmatpush1.bf16.msra.mxu0 0
    %621 = vmatprep.subr.bf16.mxu0 0
    %622 = vmatpush1.bf16.msra.mxu0 0
    %623 = vmatprep.subr.bf16.mxu0 0
    %624 = vmatpush1.bf16.msra.mxu0 0
    %625 = vmatprep.subr.bf16.mxu0 0
    %626 = vmatpush1.bf16.msra.mxu0 0
    %627 = vmatprep.subr.bf16.mxu0 0
    %628 = vmatpush1.bf16.msra.mxu0 0
    %629 = vmatprep.subr.bf16.mxu0 0
    %630 = vmatpush1.bf16.msra.mxu0 0
    %631 = vmatprep.subr.bf16.mxu0 0
    %632 = vmatpush1.bf16.msra.mxu0 0
    %633 = vmatprep.subr.bf16.mxu0 0
    %634 = vmatpush1.bf16.msra.mxu0 0
    %635 = vmatprep.subr.bf16.mxu0 0
    %636 = vmatpush1.bf16.msra.mxu0 0
    %637 = vmatprep.subr.bf16.mxu0 0
    %638 = vmatpush1.bf16.msra.mxu0 0
    %639 = vmatprep.subr.bf16.mxu0 0
    %640 = vmatpush1.bf16.msra.mxu0 0
    %641 = vmatprep.subr.bf16.mxu0 0
    %642 = vmatpush1.bf16.msra.mxu0 0
    %643 = vmatprep.subr.bf16.mxu0 0
    %644 = vmatpush1.bf16.msra.mxu0 0
    %645 = vmatprep.subr.bf16.mxu0 0
    %646 = vmatpush1.bf16.msra.mxu0 0
    %647 = vmatprep.mubr.bf16.mxu0 0
    %648 = vmatmul.mubr.bf16.gmra.mrb[0].mxu0 %v613
    %v649 = vpop.f32.mrb[0].mxu0
    %v650 = vadd.f32 0.0, %v649
    %v651 = vpop.f32.mrb[0].mxu0
    %v652 = vpop.f32.mrb[0].mxu0
    %v653 = vpop.f32.mrb[0].mxu0
    %654 = vdwg.mxu0
    %v656 = vrot.slane %v650, 6
    %v658 = vadd.f32 %v180, %v656
    %v659 = vxor.u32 %v658, 2147483648
    %v660 = vmul.f32 %v659, 1.442695
    %v661 = vpow.pop %v660
    %v662 = vadd.f32 %v661, 1.0
    %v663 = vrcp.pop %v662
    %v664 = vmul.f32 1.0, %v663
    %v665 = vtanh.pop %v658
    %v667 = vrot.slane %v596, 6
    %v669 = vmul.f32 %v664, %v667
    %671 = vrot.lane.b32.xlu0 %v665, 64
    %v672 = vpop.permute.xlu0 %671
    %v674 = vmul.f32 %v664, %v672
    %676 = vrot.lane.b32.xlu0 %v674, 32
    %v677 = vpop.permute.xlu0 %676
    %v679 = vadd.f32 %v669, %v677
    %v680 = vtanh.pop %v679
    %682 = vrot.lane.b32.xlu0 %v680, 64
    %v683 = vpop.permute.xlu0 %682
    %v685 = vmul.f32 %v664, %v683
    %687 = vrot.lane.b32.xlu0 %v685, 32
    %v688 = vpop.permute.xlu0 %687
    %690 = vst.msk [vmem:[#allocation3 + $0x8] sm:$0xc] %vm355, %v688
    %v691 = vpack.c.bf16 %v685, %v685
    %v693 = vrot.slane %v691, 1
    %694 = vrot.lane.b32.xlu0 %v693, 32
    %v695 = vpop.permute.xlu0 %694
    %v697 = vsel %vm138, %v695, 0
    %699 = vmatprep.subr.bf16.mxu0 0
    %700 = vmatpush1.bf16.msra.mxu0 %v195
    %701 = vmatprep.subr.bf16.mxu0 0
    %702 = vmatpush1.bf16.msra.mxu0 %v196
    %703 = vmatprep.subr.bf16.mxu0 0
    %704 = vmatpush1.bf16.msra.mxu0 0
    %705 = vmatprep.subr.bf16.mxu0 0
    %706 = vmatpush1.bf16.msra.mxu0 0
    %707 = vmatprep.subr.bf16.mxu0 0
    %708 = vmatpush1.bf16.msra.mxu0 0
    %709 = vmatprep.subr.bf16.mxu0 0
    %710 = vmatpush1.bf16.msra.mxu0 0
    %711 = vmatprep.subr.bf16.mxu0 0
    %712 = vmatpush1.bf16.msra.mxu0 0
    %713 = vmatprep.subr.bf16.mxu0 0
    %714 = vmatpush1.bf16.msra.mxu0 0
    %715 = vmatprep.subr.bf16.mxu0 0
    %716 = vmatpush1.bf16.msra.mxu0 0
    %717 = vmatprep.subr.bf16.mxu0 0
    %718 = vmatpush1.bf16.msra.mxu0 0
    %719 = vmatprep.subr.bf16.mxu0 0
    %720 = vmatpush1.bf16.msra.mxu0 0
    %721 = vmatprep.subr.bf16.mxu0 0
    %722 = vmatpush1.bf16.msra.mxu0 0
    %723 = vmatprep.subr.bf16.mxu0 0
    %724 = vmatpush1.bf16.msra.mxu0 0
    %725 = vmatprep.subr.bf16.mxu0 0
    %726 = vmatpush1.bf16.msra.mxu0 0
    %727 = vmatprep.subr.bf16.mxu0 0
    %728 = vmatpush1.bf16.msra.mxu0 0
    %729 = vmatprep.subr.bf16.mxu0 0
    %730 = vmatpush1.bf16.msra.mxu0 0
    %731 = vmatprep.mubr.bf16.mxu0 0
    %732 = vmatmul.mubr.bf16.gmra.mrb[0].mxu0 %v697
    %v733 = vpop.f32.mrb[0].mxu0
    %v734 = vadd.f32 0.0, %v733
    %v735 = vpop.f32.mrb[0].mxu0
    %v736 = vpop.f32.mrb[0].mxu0
    %v737 = vpop.f32.mrb[0].mxu0
    %738 = vdwg.mxu0
    %v740 = vrot.slane %v734, 4
    %v742 = vadd.f32 %v180, %v740
    %v743 = vxor.u32 %v742, 2147483648
    %v744 = vmul.f32 %v743, 1.442695
    %v745 = vpow.pop %v744
    %v746 = vadd.f32 %v745, 1.0
    %v747 = vrcp.pop %v746
    %v748 = vmul.f32 1.0, %v747
    %v749 = vtanh.pop %v742
    %v751 = vrot.slane %v679, 6
    %v753 = vmul.f32 %v748, %v751
    %755 = vrot.lane.b32.xlu0 %v749, 64
    %v756 = vpop.permute.xlu0 %755
    %v758 = vmul.f32 %v748, %v756
    %760 = vrot.lane.b32.xlu0 %v758, 32
    %v761 = vpop.permute.xlu0 %760
    %v763 = vadd.f32 %v753, %v761
    %v764 = vtanh.pop %v763
    %766 = vrot.lane.b32.xlu0 %v764, 64
    %v767 = vpop.permute.xlu0 %766
    %v769 = vmul.f32 %v748, %v767
    %771 = vrot.lane.b32.xlu0 %v769, 32
    %v772 = vpop.permute.xlu0 %771
    %774 = vst.msk [vmem:[#allocation3 + $0x8] sm:$0x30] %vm440, %v772
    %v775 = vpack.c.bf16 %v769, %v769
    %v777 = vrot.slane %v775, 2
    %778 = vrot.lane.b32.xlu0 %v777, 32
    %v779 = vpop.permute.xlu0 %778
    %v781 = vsel %vm138, %v779, 0
    %783 = vmatprep.subr.bf16.mxu0 0
    %784 = vmatpush1.bf16.msra.mxu0 %v195
    %785 = vmatprep.subr.bf16.mxu0 0
    %786 = vmatpush1.bf16.msra.mxu0 %v196
    %787 = vmatprep.subr.bf16.mxu0 0
    %788 = vmatpush1.bf16.msra.mxu0 0
    %789 = vmatprep.subr.bf16.mxu0 0
    %790 = vmatpush1.bf16.msra.mxu0 0
    %791 = vmatprep.subr.bf16.mxu0 0
    %792 = vmatpush1.bf16.msra.mxu0 0
    %793 = vmatprep.subr.bf16.mxu0 0
    %794 = vmatpush1.bf16.msra.mxu0 0
    %795 = vmatprep.subr.bf16.mxu0 0
    %796 = vmatpush1.bf16.msra.mxu0 0
    %797 = vmatprep.subr.bf16.mxu0 0
    %798 = vmatpush1.bf16.msra.mxu0 0
    %799 = vmatprep.subr.bf16.mxu0 0
    %800 = vmatpush1.bf16.msra.mxu0 0
    %801 = vmatprep.subr.bf16.mxu0 0
    %802 = vmatpush1.bf16.msra.mxu0 0
    %803 = vmatprep.subr.bf16.mxu0 0
    %804 = vmatpush1.bf16.msra.mxu0 0
    %805 = vmatprep.subr.bf16.mxu0 0
    %806 = vmatpush1.bf16.msra.mxu0 0
    %807 = vmatprep.subr.bf16.mxu0 0
    %808 = vmatpush1.bf16.msra.mxu0 0
    %809 = vmatprep.subr.bf16.mxu0 0
    %810 = vmatpush1.bf16.msra.mxu0 0
    %811 = vmatprep.subr.bf16.mxu0 0
    %812 = vmatpush1.bf16.msra.mxu0 0
    %813 = vmatprep.subr.bf16.mxu0 0
    %814 = vmatpush1.bf16.msra.mxu0 0
    %815 = vmatprep.mubr.bf16.mxu0 0
    %816 = vmatmul.mubr.bf16.gmra.mrb[0].mxu0 %v781
    %v817 = vpop.f32.mrb[0].mxu0
    %v818 = vadd.f32 0.0, %v817
    %v819 = vpop.f32.mrb[0].mxu0
    %v820 = vpop.f32.mrb[0].mxu0
    %v821 = vpop.f32.mrb[0].mxu0
    %822 = vdwg.mxu0
    %v824 = vrot.slane %v818, 2
    %v826 = vadd.f32 %v180, %v824
    %v827 = vxor.u32 %v826, 2147483648
    %v828 = vmul.f32 %v827, 1.442695
    %v829 = vpow.pop %v828
    %v830 = vadd.f32 %v829, 1.0
    %v831 = vrcp.pop %v830
    %v832 = vmul.f32 1.0, %v831
    %v833 = vtanh.pop %v826
    %v835 = vrot.slane %v763, 6
    %v837 = vmul.f32 %v832, %v835
    %839 = vrot.lane.b32.xlu0 %v833, 64
    %v840 = vpop.permute.xlu0 %839
    %v842 = vmul.f32 %v832, %v840
    %844 = vrot.lane.b32.xlu0 %v842, 32
    %v845 = vpop.permute.xlu0 %844
    %v847 = vadd.f32 %v837, %v845
    %v848 = vtanh.pop %v847
    %850 = vrot.lane.b32.xlu0 %v848, 64
    %v851 = vpop.permute.xlu0 %850
    %v853 = vmul.f32 %v832, %v851
    %855 = vrot.lane.b32.xlu0 %v853, 32
    %v856 = vpop.permute.xlu0 %855
    %858 = vst.msk [vmem:[#allocation3 + $0x8] sm:$0xc0] %vm525, %v856
    %859 = vst.msk [vmem:[#allocation7 - $0x6] sm:$0xc0] %vm525, %v856
    %861 = vrot.lane.b32.xlu0 %v847, 96
    %v862 = vpop.permute.xlu0 %861
    %864 = vst.msk [vmem:[#allocation8 - $0x6] sm:$0xc0] %vm525, %v862
    %v865 = vld [vmem:[#allocation3] sm:$0xff]
    %v866 = vld [vmem:[#allocation3 + $0x8] sm:$0xff]
    %v867 = vpack.c.bf16 %v866, %v865
    %v868 = vld [vmem:[%s5] sm:$0xf]
    %v869 = vld [vmem:[%s5 + $0x4] sm:$0xf]
    %v870 = vld [vmem:[%s5 + $0x8] sm:$0xf]
    %v871 = vld [vmem:[%s5 + $0xc] sm:$0xf]
    %v872 = vld [vmem:[%s7] sm:$0x1]
    %v874 = vlaneseq
    %v875 = vshrl.u32 %v874, 7
    %v876 = vsub.s32 0, %v875
    %v877 = vrot.slane %v872, %v876
    %v883 = vunpack.c.l.b16 %v868
    %v884 = vunpack.c.l.b16 %v869
    %v885 = vunpack.c.l.b16 %v870
    %v886 = vunpack.c.l.b16 %v871
    %v887 = vpack.c.b16 %v884, %v883
    %v888 = vpack.c.b16 %v886, %v885
    %v892 = vsel %vm138, %v867, 0
    %894 = vmatprep.subr.bf16.mxu0 0
    %895 = vmatpush1.bf16.msra.mxu0 %v887
    %896 = vmatprep.subr.bf16.mxu0 0
    %897 = vmatpush1.bf16.msra.mxu0 %v888
    %898 = vmatprep.subr.bf16.mxu0 0
    %899 = vmatpush1.bf16.msra.mxu0 0
    %900 = vmatprep.subr.bf16.mxu0 0
    %901 = vmatpush1.bf16.msra.mxu0 0
    %902 = vmatprep.subr.bf16.mxu0 0
    %903 = vmatpush1.bf16.msra.mxu0 0
    %904 = vmatprep.subr.bf16.mxu0 0
    %905 = vmatpush1.bf16.msra.mxu0 0
    %906 = vmatprep.subr.bf16.mxu0 0
    %907 = vmatpush1.bf16.msra.mxu0 0
    %908 = vmatprep.subr.bf16.mxu0 0
    %909 = vmatpush1.bf16.msra.mxu0 0
    %910 = vmatprep.subr.bf16.mxu0 0
    %911 = vmatpush1.bf16.msra.mxu0 0
    %912 = vmatprep.subr.bf16.mxu0 0
    %913 = vmatpush1.bf16.msra.mxu0 0
    %914 = vmatprep.subr.bf16.mxu0 0
    %915 = vmatpush1.bf16.msra.mxu0 0
    %916 = vmatprep.subr.bf16.mxu0 0
    %917 = vmatpush1.bf16.msra.mxu0 0
    %918 = vmatprep.subr.bf16.mxu0 0
    %919 = vmatpush1.bf16.msra.mxu0 0
    %920 = vmatprep.subr.bf16.mxu0 0
    %921 = vmatpush1.bf16.msra.mxu0 0
    %922 = vmatprep.subr.bf16.mxu0 0
    %923 = vmatpush1.bf16.msra.mxu0 0
    %924 = vmatprep.subr.bf16.mxu0 0
    %925 = vmatpush1.bf16.msra.mxu0 0
    %926 = vmatprep.mubr.bf16.mxu0 0
    %927 = vmatmul.mubr.bf16.gmra.mrb[0].mxu0 %v892
    %v928 = vpop.f32.mrb[0].mxu0
    %v929 = vadd.f32 %v877, %v928
    %v930 = vpop.f32.mrb[0].mxu0
    %v931 = vpop.f32.mrb[0].mxu0
    %v932 = vadd.f32 %v877, %v931
    %v933 = vpop.f32.mrb[0].mxu0
    %934 = vdwg.mxu0
    %v935 = vld [vmem:[%s6] sm:$0xf]
    %v936 = vld [vmem:[%s6 + $0x4] sm:$0xf]
    %v937 = vld [vmem:[%s6 + $0x8] sm:$0xf]
    %v938 = vld [vmem:[%s6 + $0xc] sm:$0xf]
    %v943 = vunpack.c.l.b16 %v935
    %v944 = vunpack.c.l.b16 %v936
    %v945 = vunpack.c.l.b16 %v937
    %v946 = vunpack.c.l.b16 %v938
    %v947 = vpack.c.b16 %v944, %v943
    %v948 = vpack.c.b16 %v946, %v945
    %951 = vmatprep.subr.bf16.mxu0 0
    %952 = vmatpush1.bf16.msra.mxu0 %v947
    %953 = vmatprep.subr.bf16.mxu0 0
    %954 = vmatpush1.bf16.msra.mxu0 %v948
    %955 = vmatprep.subr.bf16.mxu0 0
    %956 = vmatpush1.bf16.msra.mxu0 0
    %957 = vmatprep.subr.bf16.mxu0 0
    %958 = vmatpush1.bf16.msra.mxu0 0
    %959 = vmatprep.subr.bf16.mxu0 0
    %960 = vmatpush1.bf16.msra.mxu0 0
    %961 = vmatprep.subr.bf16.mxu0 0
    %962 = vmatpush1.bf16.msra.mxu0 0
    %963 = vmatprep.subr.bf16.mxu0 0
    %964 = vmatpush1.bf16.msra.mxu0 0
    %965 = vmatprep.subr.bf16.mxu0 0
    %966 = vmatpush1.bf16.msra.mxu0 0
    %967 = vmatprep.subr.bf16.mxu0 0
    %968 = vmatpush1.bf16.msra.mxu0 0
    %969 = vmatprep.subr.bf16.mxu0 0
    %970 = vmatpush1.bf16.msra.mxu0 0
    %971 = vmatprep.subr.bf16.mxu0 0
    %972 = vmatpush1.bf16.msra.mxu0 0
    %973 = vmatprep.subr.bf16.mxu0 0
    %974 = vmatpush1.bf16.msra.mxu0 0
    %975 = vmatprep.subr.bf16.mxu0 0
    %976 = vmatpush1.bf16.msra.mxu0 0
    %977 = vmatprep.subr.bf16.mxu0 0
    %978 = vmatpush1.bf16.msra.mxu0 0
    %979 = vmatprep.subr.bf16.mxu0 0
    %980 = vmatpush1.bf16.msra.mxu0 0
    %981 = vmatprep.subr.bf16.mxu0 0
    %982 = vmatpush1.bf16.msra.mxu0 0
    %983 = vmatprep.mubr.bf16.mxu0 0
    %984 = vmatmul.mubr.bf16.gmra.mrb[0].mxu0 %v200
    %v985 = vpop.f32.mrb[0].mxu0
    %v986 = vadd.f32 0.0, %v985
    %v987 = vpop.f32.mrb[0].mxu0
    %v988 = vpop.f32.mrb[0].mxu0
    %v989 = vpop.f32.mrb[0].mxu0
    %990 = vdwg.mxu0
    %v991 = vadd.f32 %v929, %v986
    %v992 = vxor.u32 %v991, 2147483648
    %v993 = vmul.f32 %v992, 1.442695
    %v994 = vpow.pop %v993
    %v995 = vadd.f32 %v994, 1.0
    %v996 = vrcp.pop %v995
    %v997 = vmul.f32 1.0, %v996
    %v998 = vtanh.pop %v991
    %v999 = vmul.f32 %v997, 0.0
    %1001 = vrot.lane.b32.xlu0 %v998, 64
    %v1002 = vpop.permute.xlu0 %1001
    %v1004 = vmul.f32 %v997, %v1002
    %1006 = vrot.lane.b32.xlu0 %v1004, 32
    %v1007 = vpop.permute.xlu0 %1006
    %v1009 = vadd.f32 %v999, %v1007
    %v1010 = vtanh.pop %v1009
    %1012 = vrot.lane.b32.xlu0 %v1010, 64
    %v1013 = vpop.permute.xlu0 %1012
    %v1015 = vmul.f32 %v997, %v1013
    %v1016 = vpack.c.bf16 %v1015, %v1015
    %1018 = vrot.lane.b32.xlu0 %v1016, 32
    %v1019 = vpop.permute.xlu0 %1018
    %v1021 = vsel %vm138, %v1019, 0
    %1023 = vmatprep.subr.bf16.mxu0 0
    %1024 = vmatpush1.bf16.msra.mxu0 %v947
    %1025 = vmatprep.subr.bf16.mxu0 0
    %1026 = vmatpush1.bf16.msra.mxu0 %v948
    %1027 = vmatprep.subr.bf16.mxu0 0
    %1028 = vmatpush1.bf16.msra.mxu0 0
    %1029 = vmatprep.subr.bf16.mxu0 0
    %1030 = vmatpush1.bf16.msra.mxu0 0
    %1031 = vmatprep.subr.bf16.mxu0 0
    %1032 = vmatpush1.bf16.msra.mxu0 0
    %1033 = vmatprep.subr.bf16.mxu0 0
    %1034 = vmatpush1.bf16.msra.mxu0 0
    %1035 = vmatprep.subr.bf16.mxu0 0
    %1036 = vmatpush1.bf16.msra.mxu0 0
    %1037 = vmatprep.subr.bf16.mxu0 0
    %1038 = vmatpush1.bf16.msra.mxu0 0
    %1039 = vmatprep.subr.bf16.mxu0 0
    %1040 = vmatpush1.bf16.msra.mxu0 0
    %1041 = vmatprep.subr.bf16.mxu0 0
    %1042 = vmatpush1.bf16.msra.mxu0 0
    %1043 = vmatprep.subr.bf16.mxu0 0
    %1044 = vmatpush1.bf16.msra.mxu0 0
    %1045 = vmatprep.subr.bf16.mxu0 0
    %1046 = vmatpush1.bf16.msra.mxu0 0
    %1047 = vmatprep.subr.bf16.mxu0 0
    %1048 = vmatpush1.bf16.msra.mxu0 0
    %1049 = vmatprep.subr.bf16.mxu0 0
    %1050 = vmatpush1.bf16.msra.mxu0 0
    %1051 = vmatprep.subr.bf16.mxu0 0
    %1052 = vmatpush1.bf16.msra.mxu0 0
    %1053 = vmatprep.subr.bf16.mxu0 0
    %1054 = vmatpush1.bf16.msra.mxu0 0
    %1055 = vmatprep.mubr.bf16.mxu0 0
    %1056 = vmatmul.mubr.bf16.gmra.mrb[0].mxu0 %v1021
    %v1057 = vpop.f32.mrb[0].mxu0
    %v1058 = vadd.f32 0.0, %v1057
    %v1059 = vpop.f32.mrb[0].mxu0
    %v1060 = vpop.f32.mrb[0].mxu0
    %v1061 = vpop.f32.mrb[0].mxu0
    %1062 = vdwg.mxu0
    %v1064 = vrot.slane %v1058, 6
    %v1066 = vadd.f32 %v929, %v1064
    %v1067 = vxor.u32 %v1066, 2147483648
    %v1068 = vmul.f32 %v1067, 1.442695
    %v1069 = vpow.pop %v1068
    %v1070 = vadd.f32 %v1069, 1.0
    %v1071 = vrcp.pop %v1070
    %v1072 = vmul.f32 1.0, %v1071
    %v1073 = vtanh.pop %v1066
    %v1075 = vrot.slane %v1009, 6
    %v1077 = vmul.f32 %v1072, %v1075
    %1079 = vrot.lane.b32.xlu0 %v1073, 64
    %v1080 = vpop.permute.xlu0 %1079
    %v1082 = vmul.f32 %v1072, %v1080
    %1084 = vrot.lane.b32.xlu0 %v1082, 32
    %v1085 = vpop.permute.xlu0 %1084
    %v1087 = vadd.f32 %v1077, %v1085
    %v1088 = vtanh.pop %v1087
    %1090 = vrot.lane.b32.xlu0 %v1088, 64
    %v1091 = vpop.permute.xlu0 %1090
    %v1093 = vmul.f32 %v1072, %v1091
    %v1094 = vpack.c.bf16 %v1093, %v1093
    %v1096 = vrot.slane %v1094, 1
    %1097 = vrot.lane.b32.xlu0 %v1096, 32
    %v1098 = vpop.permute.xlu0 %1097
    %v1100 = vsel %vm138, %v1098, 0
    %1102 = vmatprep.subr.bf16.mxu0 0
    %1103 = vmatpush1.bf16.msra.mxu0 %v947
    %1104 = vmatprep.subr.bf16.mxu0 0
    %1105 = vmatpush1.bf16.msra.mxu0 %v948
    %1106 = vmatprep.subr.bf16.mxu0 0
    %1107 = vmatpush1.bf16.msra.mxu0 0
    %1108 = vmatprep.subr.bf16.mxu0 0
    %1109 = vmatpush1.bf16.msra.mxu0 0
    %1110 = vmatprep.subr.bf16.mxu0 0
    %1111 = vmatpush1.bf16.msra.mxu0 0
    %1112 = vmatprep.subr.bf16.mxu0 0
    %1113 = vmatpush1.bf16.msra.mxu0 0
    %1114 = vmatprep.subr.bf16.mxu0 0
    %1115 = vmatpush1.bf16.msra.mxu0 0
    %1116 = vmatprep.subr.bf16.mxu0 0
    %1117 = vmatpush1.bf16.msra.mxu0 0
    %1118 = vmatprep.subr.bf16.mxu0 0
    %1119 = vmatpush1.bf16.msra.mxu0 0
    %1120 = vmatprep.subr.bf16.mxu0 0
    %1121 = vmatpush1.bf16.msra.mxu0 0
    %1122 = vmatprep.subr.bf16.mxu0 0
    %1123 = vmatpush1.bf16.msra.mxu0 0
    %1124 = vmatprep.subr.bf16.mxu0 0
    %1125 = vmatpush1.bf16.msra.mxu0 0
    %1126 = vmatprep.subr.bf16.mxu0 0
    %1127 = vmatpush1.bf16.msra.mxu0 0
    %1128 = vmatprep.subr.bf16.mxu0 0
    %1129 = vmatpush1.bf16.msra.mxu0 0
    %1130 = vmatprep.subr.bf16.mxu0 0
    %1131 = vmatpush1.bf16.msra.mxu0 0
    %1132 = vmatprep.subr.bf16.mxu0 0
    %1133 = vmatpush1.bf16.msra.mxu0 0
    %1134 = vmatprep.mubr.bf16.mxu0 0
    %1135 = vmatmul.mubr.bf16.gmra.mrb[0].mxu0 %v1100
    %v1136 = vpop.f32.mrb[0].mxu0
    %v1137 = vadd.f32 0.0, %v1136
    %v1138 = vpop.f32.mrb[0].mxu0
    %v1139 = vpop.f32.mrb[0].mxu0
    %v1140 = vpop.f32.mrb[0].mxu0
    %1141 = vdwg.mxu0
    %v1143 = vrot.slane %v1137, 4
    %v1145 = vadd.f32 %v929, %v1143
    %v1146 = vxor.u32 %v1145, 2147483648
    %v1147 = vmul.f32 %v1146, 1.442695
    %v1148 = vpow.pop %v1147
    %v1149 = vadd.f32 %v1148, 1.0
    %v1150 = vrcp.pop %v1149
    %v1151 = vmul.f32 1.0, %v1150
    %v1152 = vtanh.pop %v1145
    %v1154 = vrot.slane %v1087, 6
    %v1156 = vmul.f32 %v1151, %v1154
    %1158 = vrot.lane.b32.xlu0 %v1152, 64
    %v1159 = vpop.permute.xlu0 %1158
    %v1161 = vmul.f32 %v1151, %v1159
    %1163 = vrot.lane.b32.xlu0 %v1161, 32
    %v1164 = vpop.permute.xlu0 %1163
    %v1166 = vadd.f32 %v1156, %v1164
    %v1167 = vtanh.pop %v1166
    %1169 = vrot.lane.b32.xlu0 %v1167, 64
    %v1170 = vpop.permute.xlu0 %1169
    %v1172 = vmul.f32 %v1151, %v1170
    %v1173 = vpack.c.bf16 %v1172, %v1172
    %v1175 = vrot.slane %v1173, 2
    %1176 = vrot.lane.b32.xlu0 %v1175, 32
    %v1177 = vpop.permute.xlu0 %1176
    %v1179 = vsel %vm138, %v1177, 0
    %1181 = vmatprep.subr.bf16.mxu0 0
    %1182 = vmatpush1.bf16.msra.mxu0 %v947
    %1183 = vmatprep.subr.bf16.mxu0 0
    %1184 = vmatpush1.bf16.msra.mxu0 %v948
    %1185 = vmatprep.subr.bf16.mxu0 0
    %1186 = vmatpush1.bf16.msra.mxu0 0
    %1187 = vmatprep.subr.bf16.mxu0 0
    %1188 = vmatpush1.bf16.msra.mxu0 0
    %1189 = vmatprep.subr.bf16.mxu0 0
    %1190 = vmatpush1.bf16.msra.mxu0 0
    %1191 = vmatprep.subr.bf16.mxu0 0
    %1192 = vmatpush1.bf16.msra.mxu0 0
    %1193 = vmatprep.subr.bf16.mxu0 0
    %1194 = vmatpush1.bf16.msra.mxu0 0
    %1195 = vmatprep.subr.bf16.mxu0 0
    %1196 = vmatpush1.bf16.msra.mxu0 0
    %1197 = vmatprep.subr.bf16.mxu0 0
    %1198 = vmatpush1.bf16.msra.mxu0 0
    %1199 = vmatprep.subr.bf16.mxu0 0
    %1200 = vmatpush1.bf16.msra.mxu0 0
    %1201 = vmatprep.subr.bf16.mxu0 0
    %1202 = vmatpush1.bf16.msra.mxu0 0
    %1203 = vmatprep.subr.bf16.mxu0 0
    %1204 = vmatpush1.bf16.msra.mxu0 0
    %1205 = vmatprep.subr.bf16.mxu0 0
    %1206 = vmatpush1.bf16.msra.mxu0 0
    %1207 = vmatprep.subr.bf16.mxu0 0
    %1208 = vmatpush1.bf16.msra.mxu0 0
    %1209 = vmatprep.subr.bf16.mxu0 0
    %1210 = vmatpush1.bf16.msra.mxu0 0
    %1211 = vmatprep.subr.bf16.mxu0 0
    %1212 = vmatpush1.bf16.msra.mxu0 0
    %1213 = vmatprep.mubr.bf16.mxu0 0
    %1214 = vmatmul.mubr.bf16.gmra.mrb[0].mxu0 %v1179
    %v1215 = vpop.f32.mrb[0].mxu0
    %v1216 = vadd.f32 0.0, %v1215
    %v1217 = vpop.f32.mrb[0].mxu0
    %v1218 = vpop.f32.mrb[0].mxu0
    %v1219 = vpop.f32.mrb[0].mxu0
    %1220 = vdwg.mxu0
    %v1222 = vrot.slane %v1216, 2
    %v1224 = vadd.f32 %v929, %v1222
    %v1225 = vxor.u32 %v1224, 2147483648
    %v1226 = vmul.f32 %v1225, 1.442695
    %v1227 = vpow.pop %v1226
    %v1228 = vadd.f32 %v1227, 1.0
    %v1229 = vrcp.pop %v1228
    %v1230 = vmul.f32 1.0, %v1229
    %v1231 = vtanh.pop %v1224
    %v1233 = vrot.slane %v1166, 6
    %v1235 = vmul.f32 %v1230, %v1233
    %1237 = vrot.lane.b32.xlu0 %v1231, 64
    %v1238 = vpop.permute.xlu0 %1237
    %v1240 = vmul.f32 %v1230, %v1238
    %1242 = vrot.lane.b32.xlu0 %v1240, 32
    %v1243 = vpop.permute.xlu0 %1242
    %v1245 = vadd.f32 %v1235, %v1243
    %v1246 = vtanh.pop %v1245
    %1248 = vrot.lane.b32.xlu0 %v1246, 64
    %v1249 = vpop.permute.xlu0 %1248
    %v1251 = vmul.f32 %v1230, %v1249
    %v1252 = vpack.c.bf16 %v1251, %v1251
    %v1254 = vrot.slane %v1252, 3
    %1255 = vrot.lane.b32.xlu0 %v1254, 32
    %v1256 = vpop.permute.xlu0 %1255
    %v1258 = vsel %vm138, %v1256, 0
    %1260 = vmatprep.subr.bf16.mxu0 0
    %1261 = vmatpush1.bf16.msra.mxu0 %v947
    %1262 = vmatprep.subr.bf16.mxu0 0
    %1263 = vmatpush1.bf16.msra.mxu0 %v948
    %1264 = vmatprep.subr.bf16.mxu0 0
    %1265 = vmatpush1.bf16.msra.mxu0 0
    %1266 = vmatprep.subr.bf16.mxu0 0
    %1267 = vmatpush1.bf16.msra.mxu0 0
    %1268 = vmatprep.subr.bf16.mxu0 0
    %1269 = vmatpush1.bf16.msra.mxu0 0
    %1270 = vmatprep.subr.bf16.mxu0 0
    %1271 = vmatpush1.bf16.msra.mxu0 0
    %1272 = vmatprep.subr.bf16.mxu0 0
    %1273 = vmatpush1.bf16.msra.mxu0 0
    %1274 = vmatprep.subr.bf16.mxu0 0
    %1275 = vmatpush1.bf16.msra.mxu0 0
    %1276 = vmatprep.subr.bf16.mxu0 0
    %1277 = vmatpush1.bf16.msra.mxu0 0
    %1278 = vmatprep.subr.bf16.mxu0 0
    %1279 = vmatpush1.bf16.msra.mxu0 0
    %1280 = vmatprep.subr.bf16.mxu0 0
    %1281 = vmatpush1.bf16.msra.mxu0 0
    %1282 = vmatprep.subr.bf16.mxu0 0
    %1283 = vmatpush1.bf16.msra.mxu0 0
    %1284 = vmatprep.subr.bf16.mxu0 0
    %1285 = vmatpush1.bf16.msra.mxu0 0
    %1286 = vmatprep.subr.bf16.mxu0 0
    %1287 = vmatpush1.bf16.msra.mxu0 0
    %1288 = vmatprep.subr.bf16.mxu0 0
    %1289 = vmatpush1.bf16.msra.mxu0 0
    %1290 = vmatprep.subr.bf16.mxu0 0
    %1291 = vmatpush1.bf16.msra.mxu0 0
    %1292 = vmatprep.mubr.bf16.mxu0 0
    %1293 = vmatmul.mubr.bf16.gmra.mrb[0].mxu0 %v1258
    %v1294 = vpop.f32.mrb[0].mxu0
    %v1295 = vadd.f32 0.0, %v1294
    %v1296 = vpop.f32.mrb[0].mxu0
    %v1297 = vpop.f32.mrb[0].mxu0
    %v1298 = vpop.f32.mrb[0].mxu0
    %1299 = vdwg.mxu0
    %v1300 = vadd.f32 %v932, %v1295
    %v1301 = vxor.u32 %v1300, 2147483648
    %v1302 = vmul.f32 %v1301, 1.442695
    %v1303 = vpow.pop %v1302
    %v1304 = vadd.f32 %v1303, 1.0
    %v1305 = vrcp.pop %v1304
    %v1306 = vmul.f32 1.0, %v1305
    %v1307 = vtanh.pop %v1300
    %v1309 = vrot.slane %v1245, 6
    %v1311 = vmul.f32 %v1306, %v1309
    %1313 = vrot.lane.b32.xlu0 %v1307, 64
    %v1314 = vpop.permute.xlu0 %1313
    %v1316 = vmul.f32 %v1306, %v1314
    %1318 = vrot.lane.b32.xlu0 %v1316, 32
    %v1319 = vpop.permute.xlu0 %1318
    %v1321 = vadd.f32 %v1311, %v1319
    %v1322 = vtanh.pop %v1321
    %1324 = vrot.lane.b32.xlu0 %v1322, 64
    %v1325 = vpop.permute.xlu0 %1324
    %v1327 = vmul.f32 %v1306, %v1325
    %v1328 = vpack.c.bf16 %v1327, %v1327
    %1330 = vrot.lane.b32.xlu0 %v1328, 32
    %v1331 = vpop.permute.xlu0 %1330
    %v1333 = vsel %vm138, %v1331, 0
    %1335 = vmatprep.subr.bf16.mxu0 0
    %1336 = vmatpush1.bf16.msra.mxu0 %v947
    %1337 = vmatprep.subr.bf16.mxu0 0
    %1338 = vmatpush1.bf16.msra.mxu0 %v948
    %1339 = vmatprep.subr.bf16.mxu0 0
    %1340 = vmatpush1.bf16.msra.mxu0 0
    %1341 = vmatprep.subr.bf16.mxu0 0
    %1342 = vmatpush1.bf16.msra.mxu0 0
    %1343 = vmatprep.subr.bf16.mxu0 0
    %1344 = vmatpush1.bf16.msra.mxu0 0
    %1345 = vmatprep.subr.bf16.mxu0 0
    %1346 = vmatpush1.bf16.msra.mxu0 0
    %1347 = vmatprep.subr.bf16.mxu0 0
    %1348 = vmatpush1.bf16.msra.mxu0 0
    %1349 = vmatprep.subr.bf16.mxu0 0
    %1350 = vmatpush1.bf16.msra.mxu0 0
    %1351 = vmatprep.subr.bf16.mxu0 0
    %1352 = vmatpush1.bf16.msra.mxu0 0
    %1353 = vmatprep.subr.bf16.mxu0 0
    %1354 = vmatpush1.bf16.msra.mxu0 0
    %1355 = vmatprep.subr.bf16.mxu0 0
    %1356 = vmatpush1.bf16.msra.mxu0 0
    %1357 = vmatprep.subr.bf16.mxu0 0
    %1358 = vmatpush1.bf16.msra.mxu0 0
    %1359 = vmatprep.subr.bf16.mxu0 0
    %1360 = vmatpush1.bf16.msra.mxu0 0
    %1361 = vmatprep.subr.bf16.mxu0 0
    %1362 = vmatpush1.bf16.msra.mxu0 0
    %1363 = vmatprep.subr.bf16.mxu0 0
    %1364 = vmatpush1.bf16.msra.mxu0 0
    %1365 = vmatprep.subr.bf16.mxu0 0
    %1366 = vmatpush1.bf16.msra.mxu0 0
    %1367 = vmatprep.mubr.bf16.mxu0 0
    %1368 = vmatmul.mubr.bf16.gmra.mrb[0].mxu0 %v1333
    %v1369 = vpop.f32.mrb[0].mxu0
    %v1370 = vadd.f32 0.0, %v1369
    %v1371 = vpop.f32.mrb[0].mxu0
    %v1372 = vpop.f32.mrb[0].mxu0
    %v1373 = vpop.f32.mrb[0].mxu0
    %1374 = vdwg.mxu0
    %v1376 = vrot.slane %v1370, 6
    %v1378 = vadd.f32 %v932, %v1376
    %v1379 = vxor.u32 %v1378, 2147483648
    %v1380 = vmul.f32 %v1379, 1.442695
    %v1381 = vpow.pop %v1380
    %v1382 = vadd.f32 %v1381, 1.0
    %v1383 = vrcp.pop %v1382
    %v1384 = vmul.f32 1.0, %v1383
    %v1385 = vtanh.pop %v1378
    %v1387 = vrot.slane %v1321, 6
    %v1389 = vmul.f32 %v1384, %v1387
    %1391 = vrot.lane.b32.xlu0 %v1385, 64
    %v1392 = vpop.permute.xlu0 %1391
    %v1394 = vmul.f32 %v1384, %v1392
    %1396 = vrot.lane.b32.xlu0 %v1394, 32
    %v1397 = vpop.permute.xlu0 %1396
    %v1399 = vadd.f32 %v1389, %v1397
    %v1400 = vtanh.pop %v1399
    %1402 = vrot.lane.b32.xlu0 %v1400, 64
    %v1403 = vpop.permute.xlu0 %1402
    %v1405 = vmul.f32 %v1384, %v1403
    %v1406 = vpack.c.bf16 %v1405, %v1405
    %v1408 = vrot.slane %v1406, 1
    %1409 = vrot.lane.b32.xlu0 %v1408, 32
    %v1410 = vpop.permute.xlu0 %1409
    %v1412 = vsel %vm138, %v1410, 0
    %1414 = vmatprep.subr.bf16.mxu0 0
    %1415 = vmatpush1.bf16.msra.mxu0 %v947
    %1416 = vmatprep.subr.bf16.mxu0 0
    %1417 = vmatpush1.bf16.msra.mxu0 %v948
    %1418 = vmatprep.subr.bf16.mxu0 0
    %1419 = vmatpush1.bf16.msra.mxu0 0
    %1420 = vmatprep.subr.bf16.mxu0 0
    %1421 = vmatpush1.bf16.msra.mxu0 0
    %1422 = vmatprep.subr.bf16.mxu0 0
    %1423 = vmatpush1.bf16.msra.mxu0 0
    %1424 = vmatprep.subr.bf16.mxu0 0
    %1425 = vmatpush1.bf16.msra.mxu0 0
    %1426 = vmatprep.subr.bf16.mxu0 0
    %1427 = vmatpush1.bf16.msra.mxu0 0
    %1428 = vmatprep.subr.bf16.mxu0 0
    %1429 = vmatpush1.bf16.msra.mxu0 0
    %1430 = vmatprep.subr.bf16.mxu0 0
    %1431 = vmatpush1.bf16.msra.mxu0 0
    %1432 = vmatprep.subr.bf16.mxu0 0
    %1433 = vmatpush1.bf16.msra.mxu0 0
    %1434 = vmatprep.subr.bf16.mxu0 0
    %1435 = vmatpush1.bf16.msra.mxu0 0
    %1436 = vmatprep.subr.bf16.mxu0 0
    %1437 = vmatpush1.bf16.msra.mxu0 0
    %1438 = vmatprep.subr.bf16.mxu0 0
    %1439 = vmatpush1.bf16.msra.mxu0 0
    %1440 = vmatprep.subr.bf16.mxu0 0
    %1441 = vmatpush1.bf16.msra.mxu0 0
    %1442 = vmatprep.subr.bf16.mxu0 0
    %1443 = vmatpush1.bf16.msra.mxu0 0
    %1444 = vmatprep.subr.bf16.mxu0 0
    %1445 = vmatpush1.bf16.msra.mxu0 0
    %1446 = vmatprep.mubr.bf16.mxu0 0
    %1447 = vmatmul.mubr.bf16.gmra.mrb[0].mxu0 %v1412
    %v1448 = vpop.f32.mrb[0].mxu0
    %v1449 = vadd.f32 0.0, %v1448
    %v1450 = vpop.f32.mrb[0].mxu0
    %v1451 = vpop.f32.mrb[0].mxu0
    %v1452 = vpop.f32.mrb[0].mxu0
    %1453 = vdwg.mxu0
    %v1455 = vrot.slane %v1449, 4
    %v1457 = vadd.f32 %v932, %v1455
    %v1458 = vxor.u32 %v1457, 2147483648
    %v1459 = vmul.f32 %v1458, 1.442695
    %v1460 = vpow.pop %v1459
    %v1461 = vadd.f32 %v1460, 1.0
    %v1462 = vrcp.pop %v1461
    %v1463 = vmul.f32 1.0, %v1462
    %v1464 = vtanh.pop %v1457
    %v1466 = vrot.slane %v1399, 6
    %v1468 = vmul.f32 %v1463, %v1466
    %1470 = vrot.lane.b32.xlu0 %v1464, 64
    %v1471 = vpop.permute.xlu0 %1470
    %v1473 = vmul.f32 %v1463, %v1471
    %1475 = vrot.lane.b32.xlu0 %v1473, 32
    %v1476 = vpop.permute.xlu0 %1475
    %v1478 = vadd.f32 %v1468, %v1476
    %v1479 = vtanh.pop %v1478
    %1481 = vrot.lane.b32.xlu0 %v1479, 64
    %v1482 = vpop.permute.xlu0 %1481
    %v1484 = vmul.f32 %v1463, %v1482
    %v1485 = vpack.c.bf16 %v1484, %v1484
    %v1487 = vrot.slane %v1485, 2
    %1488 = vrot.lane.b32.xlu0 %v1487, 32
    %v1489 = vpop.permute.xlu0 %1488
    %v1491 = vsel %vm138, %v1489, 0
    %1493 = vmatprep.subr.bf16.mxu0 0
    %1494 = vmatpush1.bf16.msra.mxu0 %v947
    %1495 = vmatprep.subr.bf16.mxu0 0
    %1496 = vmatpush1.bf16.msra.mxu0 %v948
    %1497 = vmatprep.subr.bf16.mxu0 0
    %1498 = vmatpush1.bf16.msra.mxu0 0
    %1499 = vmatprep.subr.bf16.mxu0 0
    %1500 = vmatpush1.bf16.msra.mxu0 0
    %1501 = vmatprep.subr.bf16.mxu0 0
    %1502 = vmatpush1.bf16.msra.mxu0 0
    %1503 = vmatprep.subr.bf16.mxu0 0
    %1504 = vmatpush1.bf16.msra.mxu0 0
    %1505 = vmatprep.subr.bf16.mxu0 0
    %1506 = vmatpush1.bf16.msra.mxu0 0
    %1507 = vmatprep.subr.bf16.mxu0 0
    %1508 = vmatpush1.bf16.msra.mxu0 0
    %1509 = vmatprep.subr.bf16.mxu0 0
    %1510 = vmatpush1.bf16.msra.mxu0 0
    %1511 = vmatprep.subr.bf16.mxu0 0
    %1512 = vmatpush1.bf16.msra.mxu0 0
    %1513 = vmatprep.subr.bf16.mxu0 0
    %1514 = vmatpush1.bf16.msra.mxu0 0
    %1515 = vmatprep.subr.bf16.mxu0 0
    %1516 = vmatpush1.bf16.msra.mxu0 0
    %1517 = vmatprep.subr.bf16.mxu0 0
    %1518 = vmatpush1.bf16.msra.mxu0 0
    %1519 = vmatprep.subr.bf16.mxu0 0
    %1520 = vmatpush1.bf16.msra.mxu0 0
    %1521 = vmatprep.subr.bf16.mxu0 0
    %1522 = vmatpush1.bf16.msra.mxu0 0
    %1523 = vmatprep.subr.bf16.mxu0 0
    %1524 = vmatpush1.bf16.msra.mxu0 0
    %1525 = vmatprep.mubr.bf16.mxu0 0
    %1526 = vmatmul.mubr.bf16.gmra.mrb[0].mxu0 %v1491
    %v1527 = vpop.f32.mrb[0].mxu0
    %v1528 = vadd.f32 0.0, %v1527
    %v1529 = vpop.f32.mrb[0].mxu0
    %v1530 = vpop.f32.mrb[0].mxu0
    %v1531 = vpop.f32.mrb[0].mxu0
    %1532 = vdwg.mxu0
    %v1534 = vrot.slane %v1528, 2
    %v1536 = vadd.f32 %v932, %v1534
    %v1537 = vxor.u32 %v1536, 2147483648
    %v1538 = vmul.f32 %v1537, 1.442695
    %v1539 = vpow.pop %v1538
    %v1540 = vadd.f32 %v1539, 1.0
    %v1541 = vrcp.pop %v1540
    %v1542 = vmul.f32 1.0, %v1541
    %v1543 = vtanh.pop %v1536
    %v1545 = vrot.slane %v1478, 6
    %v1547 = vmul.f32 %v1542, %v1545
    %1549 = vrot.lane.b32.xlu0 %v1543, 64
    %v1550 = vpop.permute.xlu0 %1549
    %v1552 = vmul.f32 %v1542, %v1550
    %1554 = vrot.lane.b32.xlu0 %v1552, 32
    %v1555 = vpop.permute.xlu0 %1554
    %v1557 = vadd.f32 %v1547, %v1555
    %v1558 = vtanh.pop %v1557
    %1560 = vrot.lane.b32.xlu0 %v1558, 64
    %v1561 = vpop.permute.xlu0 %1560
    %v1563 = vmul.f32 %v1542, %v1561
    %1565 = vrot.lane.b32.xlu0 %v1563, 32
    %v1566 = vpop.permute.xlu0 %1565
    %s1568 = scalar_lea.vmem [#allocation7], 2
    %1569 = vst.msk [vmem:[%s1568 - $0x6] sm:$0xc0] %vm525, %v1566
    %1571 = vrot.lane.b32.xlu0 %v1557, 96
    %v1572 = vpop.permute.xlu0 %1571
    %s1574 = scalar_lea.vmem [#allocation8], 2
    %1575 = vst.msk [vmem:[%s1574 - $0x6] sm:$0xc0] %vm525, %v1572
    // Predicated region
    $region38: #{_encoder_forward.1} parent=1 // pred_check
      _
    $region39: #{_encoder_forward.1} parent=1 // pred_check_branch
      %1577 = sbr.rel (0) target = $region41
    $region40: #{_encoder_forward.1} parent=1 // pred_region
      %s1579 = ssub.s32 64, 64
      %1580 = vsyncadd [#allocation5], %s1579
      %s1581 = sshll.u32 [#allocation7], 4
      %s1582 = int_to_ptr.vmem [resolvable:$true] %s1581
      %1587 = dma.vmem_to_hbm [thread:$0]  %s1582, 64, %s8, [#allocation5], 32, 32, 2
    $region41: #{_encoder_forward.1} parent=1 // pred_fallthru
      _
    // Predicated region
    $region42: #{_encoder_forward.1} parent=1 // pred_check
      _
    $region43: #{_encoder_forward.1} parent=1 // pred_check_branch
      %1589 = sbr.rel (0) target = $region45
    $region44: #{_encoder_forward.1} parent=1 // pred_region
      %s1591 = ssub.s32 64, 64
      %1592 = vsyncadd [#allocation9], %s1591
      %s1593 = sshll.u32 [#allocation8], 4
      %s1594 = int_to_ptr.vmem [resolvable:$true] %s1593
      %1599 = dma.vmem_to_hbm [thread:$0]  %s1594, 64, %s9, [#allocation9], 32, 32, 2
    $region45: #{_encoder_forward.1} parent=1 // pred_fallthru
      _
    // Predicated region
    $region46: #{_encoder_forward.1} parent=1 // pred_check
      _
    $region47: #{_encoder_forward.1} parent=1 // pred_check_branch
      %1601 = sbr.rel (0) target = $region49
    $region48: #{_encoder_forward.1} parent=1 // pred_region
      %1602 = dma.done [#allocation5], 64
    $region49: #{_encoder_forward.1} parent=1 // pred_fallthru
      _
    // Predicated region
    $region50: #{_encoder_forward.1} parent=1 // pred_check
      _
    $region51: #{_encoder_forward.1} parent=1 // pred_check_branch
      %1604 = sbr.rel (0) target = $region53
    $region52: #{_encoder_forward.1} parent=1 // pred_region
      %1605 = dma.done [#allocation9], 64
    $region53: #{_encoder_forward.1} parent=1 // pred_fallthru
      _
    %1606 = vsyncpa [#allocation5], 1
    %1607 = vsyncpa [#allocation9], 1
    %1608 = vsyncpa [#allocation6], 1

</llo_original>
